<compile_context>
chip_gen: v7x
topology: tpu7x:2x2x1
jax: 0.10.0
libtpu: 0.0.40
codegen_flags: <defaults>
</compile_context>

<pallas_src>
import math

import jax
import jax.numpy as jnp
from jax.experimental import pallas as pl
from jax.experimental.pallas import tpu as pltpu


def _gelu(v):
    # torch.nn.GELU() default = exact erf-based GELU
    return 0.5 * v * (1.0 + jax.lax.erf(v * (1.0 / math.sqrt(2.0))))


def _lane_roll(v, shift):
    # rotate along the lane (last) axis by a static amount, jnp.roll semantics
    n = v.shape[-1]
    amt = shift % n
    if amt == 0:
        return v
    return pltpu.roll(v, shift=amt, axis=v.ndim - 1)


def _segment_max(v, j, length):
    # Exact per-segment max over each contiguous L-lane segment, broadcast back
    # to every lane of the segment. Masked roll/max butterfly: after distances
    # 1,2,4,... every lane has combined the full in-segment range. XLU rolls +
    # VPU selects; 2*ceil(log2(L)) rolls total.
    d = 1
    while d < length:
        from_right = _lane_roll(v, -d)
        v = jnp.where(j + d < length, jnp.maximum(v, from_right), v)
        from_left = _lane_roll(v, d)
        v = jnp.where(j >= d, jnp.maximum(v, from_left), v)
        d *= 2
    return v


def _depthwise_conv(f, w, j, length):
    # f: (C, P) with P = TB*L flattened batch*length lanes; w: (C, K).
    # Matches torch Conv1d(groups=C, stride=1, padding=K//2, bias=False):
    # out[c, p] = sum_t w[c, t] * f[c, p + t - pad], zero outside each batch's
    # own L-segment. Shift via lane rotate + boundary mask (handles both the
    # segment edges and the tile wrap-around).
    k = w.shape[-1]
    pad = k // 2
    acc = f * w[:, pad:pad + 1]          # center tap (shift 0), no mask needed
    for t in range(k):                   # K is a small static int -> unrolled
        s = t - pad
        if s == 0:
            continue
        shifted = _lane_roll(f, -s)      # shifted[p] = f[p + s]
        valid = (j + s >= 0) & (j + s < length)
        acc = acc + jnp.where(valid, shifted, 0.0) * w[:, t:t + 1]
    return acc


def _make_kernel(kernel_sizes, seq_len):
    n_levels = len(kernel_sizes)
    inv_len = 1.0 / float(seq_len)

    def kernel(x_ref, wv_ref, bv_ref, wg_ref, bg_ref, *rest):
        wf_refs = rest[:n_levels]
        wmix_ref, bmix_ref, s_ref, st_ref, j_ref, out_ref = rest[n_levels:]

        x = x_ref[...]            # (C, P)  P = TB*L
        j = j_ref[...]            # (1, P)  within-segment (length) index
        seg_sum = s_ref[...]      # (P, TB) 0/1 segment-sum matrix
        seg_bcast = st_ref[...]   # (TB, P) its transpose (segment broadcast)

        # focus = tovalue(x): (C,C) @ (C, TB*L) -> large-N MXU matmul
        focus = jnp.dot(wv_ref[...], x, preferred_element_type=jnp.float32) + bv_ref[...]

        # gates = togates(max_over_length(x)), computed for the whole tile at
        # once: segment max broadcast over lanes, then one (G,C)@(C,P) matmul
        # gives the gates already replicated across each batch's lanes.
        xmax = _segment_max(x, j, seq_len)
        gates = jnp.dot(wg_ref[...], xmax,
                        preferred_element_type=jnp.float32) + bg_ref[...]      # (G, P)

        # focal levels (depthwise conv + GELU), gated accumulation
        focus = _gelu(_depthwise_conv(focus, wf_refs[0][...], j, seq_len))
        fsum = focus * gates[0:1, :]
        for i in range(1, n_levels):
            focus = _gelu(_depthwise_conv(focus, wf_refs[i][...], j, seq_len))
            fsum = fsum + focus * gates[i:i + 1, :]

        # global focus: per-batch mean over length via the segment matrix
        gf = _gelu(jnp.dot(focus, seg_sum,
                           preferred_element_type=jnp.float32) * inv_len)      # (C, TB)
        gf_b = jnp.dot(gf, seg_bcast, preferred_element_type=jnp.float32)      # (C, P)
        fsum = fsum + gf_b * gates[n_levels:n_levels + 1, :]

        # mix_depth 1x1 conv == pointwise channel mix with bias
        fsum = jnp.dot(wmix_ref[...], fsum,
                       preferred_element_type=jnp.float32) + bmix_ref[...]

        # per-batch softmax over length fused with the weighted sum over length
        m = _segment_max(fsum, j, seq_len)                 # exact per-segment max
        e = jnp.exp(fsum - m)
        den = jnp.dot(e, seg_sum, preferred_element_type=jnp.float32)          # (C, TB)
        den_b = jnp.dot(den, seg_bcast, preferred_element_type=jnp.float32)    # (C, P)
        wgt = x * e * pl.reciprocal(den_b, approx=True)
        # out[b, c] = sum_{p in segment b} x[c,p] * softmax[c,p]  ->  (TB, C)
        out_ref[...] = jax.lax.dot_general(
            seg_bcast, wgt, (((1,), (1,)), ((), ())),
            preferred_element_type=jnp.float32)

    return kernel


def focal_pooling_1d(x, params, focal_levels, block_batch=None):
    b, c, l = x.shape
    n_levels = len(focal_levels)
    g = n_levels + 1
    f32 = jnp.float32

    # --- tiling: TB batches per grid step, lanes = TB*L (multiple of 128),
    #     TB multiple of 8 so the (TB, C) output block is sublane-aligned.
    q = max(8, 128 // math.gcd(l, 128))
    if block_batch is None:
        tb = max(1, 1024 // l)           # target ~1024 lanes per tile
    else:
        tb = max(1, int(block_batch))
    tb = ((tb + q - 1) // q) * q
    tb = min(tb, ((b + q - 1) // q) * q)  # don't tile past (padded) batch
    b_pad = ((b + tb - 1) // tb) * tb
    grid = b_pad // tb
    p = tb * l

    # --- data prep (XLA side): pad batch, go channel-major flattened
    xp = x.astype(f32)
    if b_pad != b:
        xp = jnp.pad(xp, ((0, b_pad - b), (0, 0), (0, 0)))
    xt = jnp.transpose(xp, (1, 0, 2)).reshape(c, b_pad * l)   # (C, B_pad*L)

    wv = params["tovalue_w"].astype(f32)
    bv = params["tovalue_b"].astype(f32).reshape(c, 1)
    wg = params["togates_w"].astype(f32)
    bg = params["togates_b"].astype(f32).reshape(g, 1)
    wfs = [params[f"focal_w_{i}"].astype(f32) for i in range(n_levels)]
    wmix = params["mix_w"].astype(f32)
    bmix = params["mix_b"].astype(f32).reshape(c, 1)

    # segment matrices + within-segment lane index (same for every tile)
    lane = jnp.arange(p, dtype=jnp.int32)
    seg = (lane[:, None] // l ==
           jnp.arange(tb, dtype=jnp.int32)[None, :]).astype(f32)   # (P, TB)
    seg_t = seg.T                                                   # (TB, P)
    j_lane = (lane % l)[None, :]                                    # (1, P) int32

    def const_spec(a):
        return pl.BlockSpec(a.shape, lambda i, _n=a.ndim: (0,) * _n)

    in_specs = [pl.BlockSpec((c, p), lambda i: (0, i)),
                const_spec(wv), const_spec(bv), const_spec(wg), const_spec(bg)]
    in_specs += [const_spec(w) for w in wfs]
    in_specs += [const_spec(wmix), const_spec(bmix),
                 const_spec(seg), const_spec(seg_t), const_spec(j_lane)]

    out = pl.pallas_call(
        _make_kernel([int(w.shape[-1]) for w in wfs], l),
        grid=(grid,),
        in_specs=in_specs,
        out_specs=pl.BlockSpec((tb, c), lambda i: (i, 0)),
        out_shape=jax.ShapeDtypeStruct((b_pad, c), f32),
        compiler_params=pltpu.CompilerParams(
            dimension_semantics=("parallel",),
            vmem_limit_bytes=64 * 1024 * 1024),
    )(xt, wv, bv, wg, bg, *wfs, wmix, bmix, seg, seg_t, j_lane)

    return out[:b]


def reference(x, params, focal_levels):
    # pure-JAX reference for correctness checking
    b, c, l = x.shape
    n = len(focal_levels)
    hp = jax.lax.Precision.HIGHEST

    def gelu(v):
        return 0.5 * v * (1.0 + jax.lax.erf(v / jnp.sqrt(2.0)))

    def dw(f, w):
        k = w.shape[-1]
        p = k // 2
        fp = jnp.pad(f, ((0, 0), (0, 0), (p, p)))
        return sum(fp[:, :, t:t + l] * w[None, :, t, None] for t in range(k))

    focus = jnp.einsum('ec,bcl->bel', params["tovalue_w"], x, precision=hp) \
        + params["tovalue_b"][None, :, None]
    gates = jnp.einsum('bc,gc->bg', jnp.max(x, axis=-1), params["togates_w"],
                       precision=hp) + params["togates_b"][None, :]

    focus = gelu(dw(focus, params["focal_w_0"]))
    fsum = focus * gates[:, 0][:, None, None]
    for i in range(1, n):
        focus = gelu(dw(focus, params[f"focal_w_{i}"]))
        fsum = fsum + focus * gates[:, i][:, None, None]
    gf = gelu(jnp.mean(focus, axis=-1, keepdims=True))
    fsum = fsum + gf * gates[:, n][:, None, None]
    fsum = jnp.einsum('ec,bcl->bel', params["mix_w"], fsum, precision=hp) \
        + params["mix_b"][None, :, None]
    sm = jax.nn.softmax(fsum, axis=-1)
    return jnp.sum(x * sm, axis=-1)


if __name__ == "__main__":
    B, DIM, LEN = 21, 32, 16        # non-multiple batch exercises padding
    focal_levels = [3, 5]           # sorted, unique, odd kernel sizes
    G = len(focal_levels) + 1

    key = jax.random.PRNGKey(0)
    ks = jax.random.split(key, 10)
    params = {
        "tovalue_w": jax.random.normal(ks[0], (DIM, DIM), jnp.float32) * 0.1,
        "tovalue_b": jax.random.normal(ks[1], (DIM,), jnp.float32) * 0.1,
        "togates_w": jax.random.normal(ks[2], (G, DIM), jnp.float32) * 0.1,
        "togates_b": jax.random.normal(ks[3], (G,), jnp.float32) * 0.1,
        "focal_w_0": jax.random.normal(ks[4], (DIM, focal_levels[0]), jnp.float32) * 0.3,
        "focal_w_1": jax.random.normal(ks[5], (DIM, focal_levels[1]), jnp.float32) * 0.3,
        "mix_w": jax.random.normal(ks[6], (DIM, DIM), jnp.float32) * 0.1,
        "mix_b": jax.random.normal(ks[7], (DIM,), jnp.float32) * 0.1,
    }
    x = jax.random.normal(ks[8], (B, DIM, LEN), jnp.float32)

    # block_batch=8 -> 3 grid steps of (C, 8*16=128)-lane tiles (exercises the grid)
    out = focal_pooling_1d(x, params, focal_levels, block_batch=8)
    out = jax.block_until_ready(out)

    ref = reference(x, params, focal_levels)
    assert out.shape == (B, DIM), out.shape
    assert bool(jnp.all(jnp.isfinite(out)))
    assert bool(jnp.allclose(out, ref, atol=1e-2, rtol=1e-2)), \
        f"max abs err = {float(jnp.max(jnp.abs(out - ref)))}"

    print("KERNEL_OK")
</pallas_src>

<mosaic_0001>
module attributes {stable_mosaic.version = 11 : i64} {
  func.func @kernel(%arg0: i32, %arg1: memref<32x128xf32, #tpu.memory_space<vmem>>, %arg2: memref<32x32xf32, #tpu.memory_space<vmem>>, %arg3: memref<32x1xf32, #tpu.memory_space<vmem>>, %arg4: memref<3x32xf32, #tpu.memory_space<vmem>>, %arg5: memref<3x1xf32, #tpu.memory_space<vmem>>, %arg6: memref<32x3xf32, #tpu.memory_space<vmem>>, %arg7: memref<32x5xf32, #tpu.memory_space<vmem>>, %arg8: memref<32x32xf32, #tpu.memory_space<vmem>>, %arg9: memref<32x1xf32, #tpu.memory_space<vmem>>, %arg10: memref<128x8xf32, #tpu.memory_space<vmem>>, %arg11: memref<8x128xf32, #tpu.memory_space<vmem>>, %arg12: memref<1x128xi32, #tpu.memory_space<vmem>>, %arg13: memref<8x32xf32, #tpu.memory_space<vmem>>) attributes {dimension_semantics = [#tpu.dimension_semantics<parallel>], iteration_bounds = array<i64: 3>, scalar_prefetch = 0 : i64, scratch_operands = 0 : i64, tpu.core_type = #tpu.core_type<tc>, window_params = [{transform_indices = @transform_0, window_bounds = array<i64: 32, 128>}, {pipeline_mode = #tpu.pipeline_mode<synchronous>, transform_indices = @transform_1, window_bounds = array<i64: 32, 32>}, {pipeline_mode = #tpu.pipeline_mode<synchronous>, transform_indices = @transform_2, window_bounds = array<i64: 32, 1>}, {pipeline_mode = #tpu.pipeline_mode<synchronous>, transform_indices = @transform_3, window_bounds = array<i64: 3, 32>}, {pipeline_mode = #tpu.pipeline_mode<synchronous>, transform_indices = @transform_4, window_bounds = array<i64: 3, 1>}, {pipeline_mode = #tpu.pipeline_mode<synchronous>, transform_indices = @transform_5, window_bounds = array<i64: 32, 3>}, {pipeline_mode = #tpu.pipeline_mode<synchronous>, transform_indices = @transform_6, window_bounds = array<i64: 32, 5>}, {pipeline_mode = #tpu.pipeline_mode<synchronous>, transform_indices = @transform_7, window_bounds = array<i64: 32, 32>}, {pipeline_mode = #tpu.pipeline_mode<synchronous>, transform_indices = @transform_8, window_bounds = array<i64: 32, 1>}, {pipeline_mode = #tpu.pipeline_mode<synchronous>, transform_indices = @transform_9, window_bounds = array<i64: 128, 8>}, {pipeline_mode = #tpu.pipeline_mode<synchronous>, transform_indices = @transform_10, window_bounds = array<i64: 8, 128>}, {pipeline_mode = #tpu.pipeline_mode<synchronous>, transform_indices = @transform_11, window_bounds = array<i64: 1, 128>}, {transform_indices = @transform_12, window_bounds = array<i64: 8, 32>}]} {
    %c0 = arith.constant 0 : index
    %c0_0 = arith.constant 0 : index
    %0 = vector.load %arg1[%c0, %c0_0] : memref<32x128xf32, #tpu.memory_space<vmem>>, vector<32x128xf32>
    %c0_1 = arith.constant 0 : index
    %c0_2 = arith.constant 0 : index
    %1 = vector.load %arg12[%c0_1, %c0_2] : memref<1x128xi32, #tpu.memory_space<vmem>>, vector<1x128xi32>
    %c0_3 = arith.constant 0 : index
    %c0_4 = arith.constant 0 : index
    %2 = vector.load %arg10[%c0_3, %c0_4] : memref<128x8xf32, #tpu.memory_space<vmem>>, vector<128x8xf32>
    %c0_5 = arith.constant 0 : index
    %c0_6 = arith.constant 0 : index
    %3 = vector.load %arg11[%c0_5, %c0_6] : memref<8x128xf32, #tpu.memory_space<vmem>>, vector<8x128xf32>
    %c0_7 = arith.constant 0 : index
    %c0_8 = arith.constant 0 : index
    %4 = vector.load %arg2[%c0_7, %c0_8] : memref<32x32xf32, #tpu.memory_space<vmem>>, vector<32x32xf32>
    %cst = arith.constant dense<0.000000e+00> : vector<32x128xf32>
    %5 = tpu.matmul %4, %0, %cst {dimension_numbers = #tpu.dot_dimension_numbers<[1], [0], [0], [1], [0, 0, 1, 1], [], []>} : vector<32x32xf32>, vector<32x128xf32>, vector<32x128xf32> -> vector<32x128xf32>
    %c0_9 = arith.constant 0 : index
    %c0_10 = arith.constant 0 : index
    %6 = vector.load %arg3[%c0_9, %c0_10] : memref<32x1xf32, #tpu.memory_space<vmem>>, vector<32x1xf32>
    %7 = vector.broadcast %6 : vector<32x1xf32> to vector<32x128xf32>
    %8 = arith.addf %5, %7 : vector<32x128xf32>
    %c127_i32 = arith.constant 127 : i32
    %9 = tpu.dynamic_rotate %0 by %c127_i32 dim 1 : vector<32x128xf32>, i32 -> vector<32x128xf32>
    %c1_i32 = arith.constant 1 : i32
    %10 = vector.broadcast %c1_i32 : i32 to vector<1x128xi32>
    %11 = arith.addi %1, %10 : vector<1x128xi32>
    %c16_i32 = arith.constant 16 : i32
    %12 = vector.broadcast %c16_i32 : i32 to vector<1x128xi32>
    %13 = arith.cmpi slt, %11, %12 : vector<1x128xi32>
    %14 = arith.maximumf %0, %9 : vector<32x128xf32>
    %15 = vector.shape_cast %13 : vector<1x128xi1> to vector<1x128xi1>
    %16 = vector.broadcast %15 : vector<1x128xi1> to vector<32x128xi1>
    %17 = arith.select %16, %14, %0 : vector<32x128xi1>, vector<32x128xf32>
    %c1_i32_11 = arith.constant 1 : i32
    %18 = tpu.dynamic_rotate %17 by %c1_i32_11 dim 1 : vector<32x128xf32>, i32 -> vector<32x128xf32>
    %c1_i32_12 = arith.constant 1 : i32
    %19 = vector.broadcast %c1_i32_12 : i32 to vector<1x128xi32>
    %20 = arith.cmpi sge, %1, %19 : vector<1x128xi32>
    %21 = arith.maximumf %17, %18 : vector<32x128xf32>
    %22 = vector.shape_cast %20 : vector<1x128xi1> to vector<1x128xi1>
    %23 = vector.broadcast %22 : vector<1x128xi1> to vector<32x128xi1>
    %24 = arith.select %23, %21, %17 : vector<32x128xi1>, vector<32x128xf32>
    %c126_i32 = arith.constant 126 : i32
    %25 = tpu.dynamic_rotate %24 by %c126_i32 dim 1 : vector<32x128xf32>, i32 -> vector<32x128xf32>
    %c2_i32 = arith.constant 2 : i32
    %26 = vector.broadcast %c2_i32 : i32 to vector<1x128xi32>
    %27 = arith.addi %1, %26 : vector<1x128xi32>
    %c16_i32_13 = arith.constant 16 : i32
    %28 = vector.broadcast %c16_i32_13 : i32 to vector<1x128xi32>
    %29 = arith.cmpi slt, %27, %28 : vector<1x128xi32>
    %30 = arith.maximumf %24, %25 : vector<32x128xf32>
    %31 = vector.shape_cast %29 : vector<1x128xi1> to vector<1x128xi1>
    %32 = vector.broadcast %31 : vector<1x128xi1> to vector<32x128xi1>
    %33 = arith.select %32, %30, %24 : vector<32x128xi1>, vector<32x128xf32>
    %c2_i32_14 = arith.constant 2 : i32
    %34 = tpu.dynamic_rotate %33 by %c2_i32_14 dim 1 : vector<32x128xf32>, i32 -> vector<32x128xf32>
    %c2_i32_15 = arith.constant 2 : i32
    %35 = vector.broadcast %c2_i32_15 : i32 to vector<1x128xi32>
    %36 = arith.cmpi sge, %1, %35 : vector<1x128xi32>
    %37 = arith.maximumf %33, %34 : vector<32x128xf32>
    %38 = vector.shape_cast %36 : vector<1x128xi1> to vector<1x128xi1>
    %39 = vector.broadcast %38 : vector<1x128xi1> to vector<32x128xi1>
    %40 = arith.select %39, %37, %33 : vector<32x128xi1>, vector<32x128xf32>
    %c124_i32 = arith.constant 124 : i32
    %41 = tpu.dynamic_rotate %40 by %c124_i32 dim 1 : vector<32x128xf32>, i32 -> vector<32x128xf32>
    %c4_i32 = arith.constant 4 : i32
    %42 = vector.broadcast %c4_i32 : i32 to vector<1x128xi32>
    %43 = arith.addi %1, %42 : vector<1x128xi32>
    %c16_i32_16 = arith.constant 16 : i32
    %44 = vector.broadcast %c16_i32_16 : i32 to vector<1x128xi32>
    %45 = arith.cmpi slt, %43, %44 : vector<1x128xi32>
    %46 = arith.maximumf %40, %41 : vector<32x128xf32>
    %47 = vector.shape_cast %45 : vector<1x128xi1> to vector<1x128xi1>
    %48 = vector.broadcast %47 : vector<1x128xi1> to vector<32x128xi1>
    %49 = arith.select %48, %46, %40 : vector<32x128xi1>, vector<32x128xf32>
    %c4_i32_17 = arith.constant 4 : i32
    %50 = tpu.dynamic_rotate %49 by %c4_i32_17 dim 1 : vector<32x128xf32>, i32 -> vector<32x128xf32>
    %c4_i32_18 = arith.constant 4 : i32
    %51 = vector.broadcast %c4_i32_18 : i32 to vector<1x128xi32>
    %52 = arith.cmpi sge, %1, %51 : vector<1x128xi32>
    %53 = arith.maximumf %49, %50 : vector<32x128xf32>
    %54 = vector.shape_cast %52 : vector<1x128xi1> to vector<1x128xi1>
    %55 = vector.broadcast %54 : vector<1x128xi1> to vector<32x128xi1>
    %56 = arith.select %55, %53, %49 : vector<32x128xi1>, vector<32x128xf32>
    %c120_i32 = arith.constant 120 : i32
    %57 = tpu.dynamic_rotate %56 by %c120_i32 dim 1 : vector<32x128xf32>, i32 -> vector<32x128xf32>
    %c8_i32 = arith.constant 8 : i32
    %58 = vector.broadcast %c8_i32 : i32 to vector<1x128xi32>
    %59 = arith.addi %1, %58 : vector<1x128xi32>
    %c16_i32_19 = arith.constant 16 : i32
    %60 = vector.broadcast %c16_i32_19 : i32 to vector<1x128xi32>
    %61 = arith.cmpi slt, %59, %60 : vector<1x128xi32>
    %62 = arith.maximumf %56, %57 : vector<32x128xf32>
    %63 = vector.shape_cast %61 : vector<1x128xi1> to vector<1x128xi1>
    %64 = vector.broadcast %63 : vector<1x128xi1> to vector<32x128xi1>
    %65 = arith.select %64, %62, %56 : vector<32x128xi1>, vector<32x128xf32>
    %c8_i32_20 = arith.constant 8 : i32
    %66 = tpu.dynamic_rotate %65 by %c8_i32_20 dim 1 : vector<32x128xf32>, i32 -> vector<32x128xf32>
    %c8_i32_21 = arith.constant 8 : i32
    %67 = vector.broadcast %c8_i32_21 : i32 to vector<1x128xi32>
    %68 = arith.cmpi sge, %1, %67 : vector<1x128xi32>
    %69 = arith.maximumf %65, %66 : vector<32x128xf32>
    %70 = vector.shape_cast %68 : vector<1x128xi1> to vector<1x128xi1>
    %71 = vector.broadcast %70 : vector<1x128xi1> to vector<32x128xi1>
    %72 = arith.select %71, %69, %65 : vector<32x128xi1>, vector<32x128xf32>
    %c0_22 = arith.constant 0 : index
    %c0_23 = arith.constant 0 : index
    %73 = vector.load %arg4[%c0_22, %c0_23] : memref<3x32xf32, #tpu.memory_space<vmem>>, vector<3x32xf32>
    %cst_24 = arith.constant dense<0.000000e+00> : vector<3x128xf32>
    %74 = tpu.matmul %73, %72, %cst_24 {dimension_numbers = #tpu.dot_dimension_numbers<[1], [0], [0], [1], [0, 0, 1, 1], [], []>} : vector<3x32xf32>, vector<32x128xf32>, vector<3x128xf32> -> vector<3x128xf32>
    %c0_25 = arith.constant 0 : index
    %c0_26 = arith.constant 0 : index
    %75 = vector.load %arg5[%c0_25, %c0_26] : memref<3x1xf32, #tpu.memory_space<vmem>>, vector<3x1xf32>
    %76 = vector.broadcast %75 : vector<3x1xf32> to vector<3x128xf32>
    %77 = arith.addf %74, %76 : vector<3x128xf32>
    %c0_27 = arith.constant 0 : index
    %c0_28 = arith.constant 0 : index
    %78 = vector.load %arg6[%c0_27, %c0_28] : memref<32x3xf32, #tpu.memory_space<vmem>>, vector<32x3xf32>
    %79 = vector.extract_strided_slice %78 {offsets = [0, 1], sizes = [32, 1], strides = [1, 1]} : vector<32x3xf32> to vector<32x1xf32>
    %80 = vector.broadcast %79 : vector<32x1xf32> to vector<32x128xf32>
    %81 = arith.mulf %8, %80 : vector<32x128xf32>
    %c1_i32_29 = arith.constant 1 : i32
    %82 = tpu.dynamic_rotate %8 by %c1_i32_29 dim 1 : vector<32x128xf32>, i32 -> vector<32x128xf32>
    %c-1_i32 = arith.constant -1 : i32
    %83 = vector.broadcast %c-1_i32 : i32 to vector<1x128xi32>
    %84 = arith.addi %1, %83 : vector<1x128xi32>
    %c0_i32 = arith.constant 0 : i32
    %85 = vector.broadcast %c0_i32 : i32 to vector<1x128xi32>
    %86 = arith.cmpi sge, %84, %85 : vector<1x128xi32>
    %c-1_i32_30 = arith.constant -1 : i32
    %87 = vector.broadcast %c-1_i32_30 : i32 to vector<1x128xi32>
    %88 = arith.addi %1, %87 : vector<1x128xi32>
    %c16_i32_31 = arith.constant 16 : i32
    %89 = vector.broadcast %c16_i32_31 : i32 to vector<1x128xi32>
    %90 = arith.cmpi slt, %88, %89 : vector<1x128xi32>
    %91 = arith.andi %86, %90 : vector<1x128xi1>
    %cst_32 = arith.constant 0.000000e+00 : f32
    %92 = vector.shape_cast %91 : vector<1x128xi1> to vector<1x128xi1>
    %93 = vector.broadcast %92 : vector<1x128xi1> to vector<32x128xi1>
    %94 = vector.broadcast %cst_32 : f32 to vector<32x128xf32>
    %95 = arith.select %93, %82, %94 : vector<32x128xi1>, vector<32x128xf32>
    %96 = vector.extract_strided_slice %78 {offsets = [0, 0], sizes = [32, 1], strides = [1, 1]} : vector<32x3xf32> to vector<32x1xf32>
    %97 = vector.broadcast %96 : vector<32x1xf32> to vector<32x128xf32>
    %98 = arith.mulf %95, %97 : vector<32x128xf32>
    %99 = arith.addf %81, %98 : vector<32x128xf32>
    %c127_i32_33 = arith.constant 127 : i32
    %100 = tpu.dynamic_rotate %8 by %c127_i32_33 dim 1 : vector<32x128xf32>, i32 -> vector<32x128xf32>
    %c1_i32_34 = arith.constant 1 : i32
    %101 = vector.broadcast %c1_i32_34 : i32 to vector<1x128xi32>
    %102 = arith.addi %1, %101 : vector<1x128xi32>
    %c0_i32_35 = arith.constant 0 : i32
    %103 = vector.broadcast %c0_i32_35 : i32 to vector<1x128xi32>
    %104 = arith.cmpi sge, %102, %103 : vector<1x128xi32>
    %c1_i32_36 = arith.constant 1 : i32
    %105 = vector.broadcast %c1_i32_36 : i32 to vector<1x128xi32>
    %106 = arith.addi %1, %105 : vector<1x128xi32>
    %c16_i32_37 = arith.constant 16 : i32
    %107 = vector.broadcast %c16_i32_37 : i32 to vector<1x128xi32>
    %108 = arith.cmpi slt, %106, %107 : vector<1x128xi32>
    %109 = arith.andi %104, %108 : vector<1x128xi1>
    %cst_38 = arith.constant 0.000000e+00 : f32
    %110 = vector.shape_cast %109 : vector<1x128xi1> to vector<1x128xi1>
    %111 = vector.broadcast %110 : vector<1x128xi1> to vector<32x128xi1>
    %112 = vector.broadcast %cst_38 : f32 to vector<32x128xf32>
    %113 = arith.select %111, %100, %112 : vector<32x128xi1>, vector<32x128xf32>
    %114 = vector.extract_strided_slice %78 {offsets = [0, 2], sizes = [32, 1], strides = [1, 1]} : vector<32x3xf32> to vector<32x1xf32>
    %115 = vector.broadcast %114 : vector<32x1xf32> to vector<32x128xf32>
    %116 = arith.mulf %113, %115 : vector<32x128xf32>
    %117 = arith.addf %99, %116 : vector<32x128xf32>
    %cst_39 = arith.constant 5.000000e-01 : f32
    %118 = vector.broadcast %cst_39 : f32 to vector<32x128xf32>
    %119 = arith.mulf %118, %117 : vector<32x128xf32>
    %cst_40 = arith.constant 0.707106769 : f32
    %120 = vector.broadcast %cst_40 : f32 to vector<32x128xf32>
    %121 = arith.mulf %117, %120 : vector<32x128xf32>
    %122 = math.erf %121 : vector<32x128xf32>
    %cst_41 = arith.constant 1.000000e+00 : f32
    %123 = vector.broadcast %cst_41 : f32 to vector<32x128xf32>
    %124 = arith.addf %123, %122 : vector<32x128xf32>
    %125 = arith.mulf %119, %124 : vector<32x128xf32>
    %126 = vector.extract_strided_slice %77 {offsets = [0, 0], sizes = [1, 128], strides = [1, 1]} : vector<3x128xf32> to vector<1x128xf32>
    %127 = vector.broadcast %126 : vector<1x128xf32> to vector<32x128xf32>
    %128 = arith.mulf %125, %127 : vector<32x128xf32>
    %c0_42 = arith.constant 0 : index
    %c0_43 = arith.constant 0 : index
    %129 = vector.load %arg7[%c0_42, %c0_43] : memref<32x5xf32, #tpu.memory_space<vmem>>, vector<32x5xf32>
    %130 = vector.extract_strided_slice %129 {offsets = [0, 2], sizes = [32, 1], strides = [1, 1]} : vector<32x5xf32> to vector<32x1xf32>
    %131 = vector.broadcast %130 : vector<32x1xf32> to vector<32x128xf32>
    %132 = arith.mulf %125, %131 : vector<32x128xf32>
    %c2_i32_44 = arith.constant 2 : i32
    %133 = tpu.dynamic_rotate %125 by %c2_i32_44 dim 1 : vector<32x128xf32>, i32 -> vector<32x128xf32>
    %c-2_i32 = arith.constant -2 : i32
    %134 = vector.broadcast %c-2_i32 : i32 to vector<1x128xi32>
    %135 = arith.addi %1, %134 : vector<1x128xi32>
    %c0_i32_45 = arith.constant 0 : i32
    %136 = vector.broadcast %c0_i32_45 : i32 to vector<1x128xi32>
    %137 = arith.cmpi sge, %135, %136 : vector<1x128xi32>
    %c-2_i32_46 = arith.constant -2 : i32
    %138 = vector.broadcast %c-2_i32_46 : i32 to vector<1x128xi32>
    %139 = arith.addi %1, %138 : vector<1x128xi32>
    %c16_i32_47 = arith.constant 16 : i32
    %140 = vector.broadcast %c16_i32_47 : i32 to vector<1x128xi32>
    %141 = arith.cmpi slt, %139, %140 : vector<1x128xi32>
    %142 = arith.andi %137, %141 : vector<1x128xi1>
    %cst_48 = arith.constant 0.000000e+00 : f32
    %143 = vector.shape_cast %142 : vector<1x128xi1> to vector<1x128xi1>
    %144 = vector.broadcast %143 : vector<1x128xi1> to vector<32x128xi1>
    %145 = vector.broadcast %cst_48 : f32 to vector<32x128xf32>
    %146 = arith.select %144, %133, %145 : vector<32x128xi1>, vector<32x128xf32>
    %147 = vector.extract_strided_slice %129 {offsets = [0, 0], sizes = [32, 1], strides = [1, 1]} : vector<32x5xf32> to vector<32x1xf32>
    %148 = vector.broadcast %147 : vector<32x1xf32> to vector<32x128xf32>
    %149 = arith.mulf %146, %148 : vector<32x128xf32>
    %150 = arith.addf %132, %149 : vector<32x128xf32>
    %c1_i32_49 = arith.constant 1 : i32
    %151 = tpu.dynamic_rotate %125 by %c1_i32_49 dim 1 : vector<32x128xf32>, i32 -> vector<32x128xf32>
    %c-1_i32_50 = arith.constant -1 : i32
    %152 = vector.broadcast %c-1_i32_50 : i32 to vector<1x128xi32>
    %153 = arith.addi %1, %152 : vector<1x128xi32>
    %c0_i32_51 = arith.constant 0 : i32
    %154 = vector.broadcast %c0_i32_51 : i32 to vector<1x128xi32>
    %155 = arith.cmpi sge, %153, %154 : vector<1x128xi32>
    %c-1_i32_52 = arith.constant -1 : i32
    %156 = vector.broadcast %c-1_i32_52 : i32 to vector<1x128xi32>
    %157 = arith.addi %1, %156 : vector<1x128xi32>
    %c16_i32_53 = arith.constant 16 : i32
    %158 = vector.broadcast %c16_i32_53 : i32 to vector<1x128xi32>
    %159 = arith.cmpi slt, %157, %158 : vector<1x128xi32>
    %160 = arith.andi %155, %159 : vector<1x128xi1>
    %cst_54 = arith.constant 0.000000e+00 : f32
    %161 = vector.shape_cast %160 : vector<1x128xi1> to vector<1x128xi1>
    %162 = vector.broadcast %161 : vector<1x128xi1> to vector<32x128xi1>
    %163 = vector.broadcast %cst_54 : f32 to vector<32x128xf32>
    %164 = arith.select %162, %151, %163 : vector<32x128xi1>, vector<32x128xf32>
    %165 = vector.extract_strided_slice %129 {offsets = [0, 1], sizes = [32, 1], strides = [1, 1]} : vector<32x5xf32> to vector<32x1xf32>
    %166 = vector.broadcast %165 : vector<32x1xf32> to vector<32x128xf32>
    %167 = arith.mulf %164, %166 : vector<32x128xf32>
    %168 = arith.addf %150, %167 : vector<32x128xf32>
    %c127_i32_55 = arith.constant 127 : i32
    %169 = tpu.dynamic_rotate %125 by %c127_i32_55 dim 1 : vector<32x128xf32>, i32 -> vector<32x128xf32>
    %c1_i32_56 = arith.constant 1 : i32
    %170 = vector.broadcast %c1_i32_56 : i32 to vector<1x128xi32>
    %171 = arith.addi %1, %170 : vector<1x128xi32>
    %c0_i32_57 = arith.constant 0 : i32
    %172 = vector.broadcast %c0_i32_57 : i32 to vector<1x128xi32>
    %173 = arith.cmpi sge, %171, %172 : vector<1x128xi32>
    %c1_i32_58 = arith.constant 1 : i32
    %174 = vector.broadcast %c1_i32_58 : i32 to vector<1x128xi32>
    %175 = arith.addi %1, %174 : vector<1x128xi32>
    %c16_i32_59 = arith.constant 16 : i32
    %176 = vector.broadcast %c16_i32_59 : i32 to vector<1x128xi32>
    %177 = arith.cmpi slt, %175, %176 : vector<1x128xi32>
    %178 = arith.andi %173, %177 : vector<1x128xi1>
    %cst_60 = arith.constant 0.000000e+00 : f32
    %179 = vector.shape_cast %178 : vector<1x128xi1> to vector<1x128xi1>
    %180 = vector.broadcast %179 : vector<1x128xi1> to vector<32x128xi1>
    %181 = vector.broadcast %cst_60 : f32 to vector<32x128xf32>
    %182 = arith.select %180, %169, %181 : vector<32x128xi1>, vector<32x128xf32>
    %183 = vector.extract_strided_slice %129 {offsets = [0, 3], sizes = [32, 1], strides = [1, 1]} : vector<32x5xf32> to vector<32x1xf32>
    %184 = vector.broadcast %183 : vector<32x1xf32> to vector<32x128xf32>
    %185 = arith.mulf %182, %184 : vector<32x128xf32>
    %186 = arith.addf %168, %185 : vector<32x128xf32>
    %c126_i32_61 = arith.constant 126 : i32
    %187 = tpu.dynamic_rotate %125 by %c126_i32_61 dim 1 : vector<32x128xf32>, i32 -> vector<32x128xf32>
    %c2_i32_62 = arith.constant 2 : i32
    %188 = vector.broadcast %c2_i32_62 : i32 to vector<1x128xi32>
    %189 = arith.addi %1, %188 : vector<1x128xi32>
    %c0_i32_63 = arith.constant 0 : i32
    %190 = vector.broadcast %c0_i32_63 : i32 to vector<1x128xi32>
    %191 = arith.cmpi sge, %189, %190 : vector<1x128xi32>
    %c2_i32_64 = arith.constant 2 : i32
    %192 = vector.broadcast %c2_i32_64 : i32 to vector<1x128xi32>
    %193 = arith.addi %1, %192 : vector<1x128xi32>
    %c16_i32_65 = arith.constant 16 : i32
    %194 = vector.broadcast %c16_i32_65 : i32 to vector<1x128xi32>
    %195 = arith.cmpi slt, %193, %194 : vector<1x128xi32>
    %196 = arith.andi %191, %195 : vector<1x128xi1>
    %cst_66 = arith.constant 0.000000e+00 : f32
    %197 = vector.shape_cast %196 : vector<1x128xi1> to vector<1x128xi1>
    %198 = vector.broadcast %197 : vector<1x128xi1> to vector<32x128xi1>
    %199 = vector.broadcast %cst_66 : f32 to vector<32x128xf32>
    %200 = arith.select %198, %187, %199 : vector<32x128xi1>, vector<32x128xf32>
    %201 = vector.extract_strided_slice %129 {offsets = [0, 4], sizes = [32, 1], strides = [1, 1]} : vector<32x5xf32> to vector<32x1xf32>
    %202 = vector.broadcast %201 : vector<32x1xf32> to vector<32x128xf32>
    %203 = arith.mulf %200, %202 : vector<32x128xf32>
    %204 = arith.addf %186, %203 : vector<32x128xf32>
    %cst_67 = arith.constant 5.000000e-01 : f32
    %205 = vector.broadcast %cst_67 : f32 to vector<32x128xf32>
    %206 = arith.mulf %205, %204 : vector<32x128xf32>
    %cst_68 = arith.constant 0.707106769 : f32
    %207 = vector.broadcast %cst_68 : f32 to vector<32x128xf32>
    %208 = arith.mulf %204, %207 : vector<32x128xf32>
    %209 = math.erf %208 : vector<32x128xf32>
    %cst_69 = arith.constant 1.000000e+00 : f32
    %210 = vector.broadcast %cst_69 : f32 to vector<32x128xf32>
    %211 = arith.addf %210, %209 : vector<32x128xf32>
    %212 = arith.mulf %206, %211 : vector<32x128xf32>
    %213 = vector.extract_strided_slice %77 {offsets = [1, 0], sizes = [1, 128], strides = [1, 1]} : vector<3x128xf32> to vector<1x128xf32>
    %214 = vector.broadcast %213 : vector<1x128xf32> to vector<32x128xf32>
    %215 = arith.mulf %212, %214 : vector<32x128xf32>
    %216 = arith.addf %128, %215 : vector<32x128xf32>
    %cst_70 = arith.constant dense<0.000000e+00> : vector<32x8xf32>
    %217 = tpu.matmul %212, %2, %cst_70 {dimension_numbers = #tpu.dot_dimension_numbers<[1], [0], [0], [1], [0, 0, 1, 1], [], []>} : vector<32x128xf32>, vector<128x8xf32>, vector<32x8xf32> -> vector<32x8xf32>
    %cst_71 = arith.constant 6.250000e-02 : f32
    %218 = vector.broadcast %cst_71 : f32 to vector<32x8xf32>
    %219 = arith.mulf %217, %218 : vector<32x8xf32>
    %cst_72 = arith.constant 5.000000e-01 : f32
    %220 = vector.broadcast %cst_72 : f32 to vector<32x8xf32>
    %221 = arith.mulf %220, %219 : vector<32x8xf32>
    %cst_73 = arith.constant 0.707106769 : f32
    %222 = vector.broadcast %cst_73 : f32 to vector<32x8xf32>
    %223 = arith.mulf %219, %222 : vector<32x8xf32>
    %224 = math.erf %223 : vector<32x8xf32>
    %cst_74 = arith.constant 1.000000e+00 : f32
    %225 = vector.broadcast %cst_74 : f32 to vector<32x8xf32>
    %226 = arith.addf %225, %224 : vector<32x8xf32>
    %227 = arith.mulf %221, %226 : vector<32x8xf32>
    %cst_75 = arith.constant dense<0.000000e+00> : vector<32x128xf32>
    %228 = tpu.matmul %227, %3, %cst_75 {dimension_numbers = #tpu.dot_dimension_numbers<[1], [0], [0], [1], [0, 0, 1, 1], [], []>} : vector<32x8xf32>, vector<8x128xf32>, vector<32x128xf32> -> vector<32x128xf32>
    %229 = vector.extract_strided_slice %77 {offsets = [2, 0], sizes = [1, 128], strides = [1, 1]} : vector<3x128xf32> to vector<1x128xf32>
    %230 = vector.broadcast %229 : vector<1x128xf32> to vector<32x128xf32>
    %231 = arith.mulf %228, %230 : vector<32x128xf32>
    %232 = arith.addf %216, %231 : vector<32x128xf32>
    %c0_76 = arith.constant 0 : index
    %c0_77 = arith.constant 0 : index
    %233 = vector.load %arg8[%c0_76, %c0_77] : memref<32x32xf32, #tpu.memory_space<vmem>>, vector<32x32xf32>
    %cst_78 = arith.constant dense<0.000000e+00> : vector<32x128xf32>
    %234 = tpu.matmul %233, %232, %cst_78 {dimension_numbers = #tpu.dot_dimension_numbers<[1], [0], [0], [1], [0, 0, 1, 1], [], []>} : vector<32x32xf32>, vector<32x128xf32>, vector<32x128xf32> -> vector<32x128xf32>
    %c0_79 = arith.constant 0 : index
    %c0_80 = arith.constant 0 : index
    %235 = vector.load %arg9[%c0_79, %c0_80] : memref<32x1xf32, #tpu.memory_space<vmem>>, vector<32x1xf32>
    %236 = vector.broadcast %235 : vector<32x1xf32> to vector<32x128xf32>
    %237 = arith.addf %234, %236 : vector<32x128xf32>
    %c127_i32_81 = arith.constant 127 : i32
    %238 = tpu.dynamic_rotate %237 by %c127_i32_81 dim 1 : vector<32x128xf32>, i32 -> vector<32x128xf32>
    %c1_i32_82 = arith.constant 1 : i32
    %239 = vector.broadcast %c1_i32_82 : i32 to vector<1x128xi32>
    %240 = arith.addi %1, %239 : vector<1x128xi32>
    %c16_i32_83 = arith.constant 16 : i32
    %241 = vector.broadcast %c16_i32_83 : i32 to vector<1x128xi32>
    %242 = arith.cmpi slt, %240, %241 : vector<1x128xi32>
    %243 = arith.maximumf %237, %238 : vector<32x128xf32>
    %244 = vector.shape_cast %242 : vector<1x128xi1> to vector<1x128xi1>
    %245 = vector.broadcast %244 : vector<1x128xi1> to vector<32x128xi1>
    %246 = arith.select %245, %243, %237 : vector<32x128xi1>, vector<32x128xf32>
    %c1_i32_84 = arith.constant 1 : i32
    %247 = tpu.dynamic_rotate %246 by %c1_i32_84 dim 1 : vector<32x128xf32>, i32 -> vector<32x128xf32>
    %c1_i32_85 = arith.constant 1 : i32
    %248 = vector.broadcast %c1_i32_85 : i32 to vector<1x128xi32>
    %249 = arith.cmpi sge, %1, %248 : vector<1x128xi32>
    %250 = arith.maximumf %246, %247 : vector<32x128xf32>
    %251 = vector.shape_cast %249 : vector<1x128xi1> to vector<1x128xi1>
    %252 = vector.broadcast %251 : vector<1x128xi1> to vector<32x128xi1>
    %253 = arith.select %252, %250, %246 : vector<32x128xi1>, vector<32x128xf32>
    %c126_i32_86 = arith.constant 126 : i32
    %254 = tpu.dynamic_rotate %253 by %c126_i32_86 dim 1 : vector<32x128xf32>, i32 -> vector<32x128xf32>
    %c2_i32_87 = arith.constant 2 : i32
    %255 = vector.broadcast %c2_i32_87 : i32 to vector<1x128xi32>
    %256 = arith.addi %1, %255 : vector<1x128xi32>
    %c16_i32_88 = arith.constant 16 : i32
    %257 = vector.broadcast %c16_i32_88 : i32 to vector<1x128xi32>
    %258 = arith.cmpi slt, %256, %257 : vector<1x128xi32>
    %259 = arith.maximumf %253, %254 : vector<32x128xf32>
    %260 = vector.shape_cast %258 : vector<1x128xi1> to vector<1x128xi1>
    %261 = vector.broadcast %260 : vector<1x128xi1> to vector<32x128xi1>
    %262 = arith.select %261, %259, %253 : vector<32x128xi1>, vector<32x128xf32>
    %c2_i32_89 = arith.constant 2 : i32
    %263 = tpu.dynamic_rotate %262 by %c2_i32_89 dim 1 : vector<32x128xf32>, i32 -> vector<32x128xf32>
    %c2_i32_90 = arith.constant 2 : i32
    %264 = vector.broadcast %c2_i32_90 : i32 to vector<1x128xi32>
    %265 = arith.cmpi sge, %1, %264 : vector<1x128xi32>
    %266 = arith.maximumf %262, %263 : vector<32x128xf32>
    %267 = vector.shape_cast %265 : vector<1x128xi1> to vector<1x128xi1>
    %268 = vector.broadcast %267 : vector<1x128xi1> to vector<32x128xi1>
    %269 = arith.select %268, %266, %262 : vector<32x128xi1>, vector<32x128xf32>
    %c124_i32_91 = arith.constant 124 : i32
    %270 = tpu.dynamic_rotate %269 by %c124_i32_91 dim 1 : vector<32x128xf32>, i32 -> vector<32x128xf32>
    %c4_i32_92 = arith.constant 4 : i32
    %271 = vector.broadcast %c4_i32_92 : i32 to vector<1x128xi32>
    %272 = arith.addi %1, %271 : vector<1x128xi32>
    %c16_i32_93 = arith.constant 16 : i32
    %273 = vector.broadcast %c16_i32_93 : i32 to vector<1x128xi32>
    %274 = arith.cmpi slt, %272, %273 : vector<1x128xi32>
    %275 = arith.maximumf %269, %270 : vector<32x128xf32>
    %276 = vector.shape_cast %274 : vector<1x128xi1> to vector<1x128xi1>
    %277 = vector.broadcast %276 : vector<1x128xi1> to vector<32x128xi1>
    %278 = arith.select %277, %275, %269 : vector<32x128xi1>, vector<32x128xf32>
    %c4_i32_94 = arith.constant 4 : i32
    %279 = tpu.dynamic_rotate %278 by %c4_i32_94 dim 1 : vector<32x128xf32>, i32 -> vector<32x128xf32>
    %c4_i32_95 = arith.constant 4 : i32
    %280 = vector.broadcast %c4_i32_95 : i32 to vector<1x128xi32>
    %281 = arith.cmpi sge, %1, %280 : vector<1x128xi32>
    %282 = arith.maximumf %278, %279 : vector<32x128xf32>
    %283 = vector.shape_cast %281 : vector<1x128xi1> to vector<1x128xi1>
    %284 = vector.broadcast %283 : vector<1x128xi1> to vector<32x128xi1>
    %285 = arith.select %284, %282, %278 : vector<32x128xi1>, vector<32x128xf32>
    %c120_i32_96 = arith.constant 120 : i32
    %286 = tpu.dynamic_rotate %285 by %c120_i32_96 dim 1 : vector<32x128xf32>, i32 -> vector<32x128xf32>
    %c8_i32_97 = arith.constant 8 : i32
    %287 = vector.broadcast %c8_i32_97 : i32 to vector<1x128xi32>
    %288 = arith.addi %1, %287 : vector<1x128xi32>
    %c16_i32_98 = arith.constant 16 : i32
    %289 = vector.broadcast %c16_i32_98 : i32 to vector<1x128xi32>
    %290 = arith.cmpi slt, %288, %289 : vector<1x128xi32>
    %291 = arith.maximumf %285, %286 : vector<32x128xf32>
    %292 = vector.shape_cast %290 : vector<1x128xi1> to vector<1x128xi1>
    %293 = vector.broadcast %292 : vector<1x128xi1> to vector<32x128xi1>
    %294 = arith.select %293, %291, %285 : vector<32x128xi1>, vector<32x128xf32>
    %c8_i32_99 = arith.constant 8 : i32
    %295 = tpu.dynamic_rotate %294 by %c8_i32_99 dim 1 : vector<32x128xf32>, i32 -> vector<32x128xf32>
    %c8_i32_100 = arith.constant 8 : i32
    %296 = vector.broadcast %c8_i32_100 : i32 to vector<1x128xi32>
    %297 = arith.cmpi sge, %1, %296 : vector<1x128xi32>
    %298 = arith.maximumf %294, %295 : vector<32x128xf32>
    %299 = vector.shape_cast %297 : vector<1x128xi1> to vector<1x128xi1>
    %300 = vector.broadcast %299 : vector<1x128xi1> to vector<32x128xi1>
    %301 = arith.select %300, %298, %294 : vector<32x128xi1>, vector<32x128xf32>
    %302 = arith.subf %237, %301 : vector<32x128xf32>
    %303 = math.exp %302 : vector<32x128xf32>
    %cst_101 = arith.constant dense<0.000000e+00> : vector<32x8xf32>
    %304 = tpu.matmul %303, %2, %cst_101 {dimension_numbers = #tpu.dot_dimension_numbers<[1], [0], [0], [1], [0, 0, 1, 1], [], []>} : vector<32x128xf32>, vector<128x8xf32>, vector<32x8xf32> -> vector<32x8xf32>
    %cst_102 = arith.constant dense<0.000000e+00> : vector<32x128xf32>
    %305 = tpu.matmul %304, %3, %cst_102 {dimension_numbers = #tpu.dot_dimension_numbers<[1], [0], [0], [1], [0, 0, 1, 1], [], []>} : vector<32x8xf32>, vector<8x128xf32>, vector<32x128xf32> -> vector<32x128xf32>
    %306 = arith.mulf %0, %303 : vector<32x128xf32>
    %307 = tpu.reciprocal %305 {approx = true} : vector<32x128xf32> -> vector<32x128xf32>
    %308 = arith.mulf %306, %307 : vector<32x128xf32>
    %cst_103 = arith.constant dense<0.000000e+00> : vector<8x32xf32>
    %309 = tpu.matmul %3, %308, %cst_103 {dimension_numbers = #tpu.dot_dimension_numbers<[1], [1], [0], [0], [0, 0, 1, 0], [], []>} : vector<8x128xf32>, vector<32x128xf32>, vector<8x32xf32> -> vector<8x32xf32>
    %c0_104 = arith.constant 0 : index
    %c0_105 = arith.constant 0 : index
    %310 = vector.load %arg13[%c0_104, %c0_105] : memref<8x32xf32, #tpu.memory_space<vmem>>, vector<8x32xf32>
    tpu.vector_store %arg13[%c0_104, %c0_105], %309 {strides = array<i32>} : memref<8x32xf32, #tpu.memory_space<vmem>>, vector<8x32xf32>,
    return
  }
  func.func @transform_0(%arg0: i32) -> (i32, i32) {
    %c0_i32 = arith.constant 0 : i32
    %c0_i32_0 = arith.constant 0 : i32
    return %c0_i32, %arg0 : i32, i32
  }
  func.func @transform_1(%arg0: i32) -> (i32, i32) {
    %c0_i32 = arith.constant 0 : i32
    %c0_i32_0 = arith.constant 0 : i32
    %c0_i32_1 = arith.constant 0 : i32
    return %c0_i32, %c0_i32_0 : i32, i32
  }
  func.func @transform_2(%arg0: i32) -> (i32, i32) {
    %c0_i32 = arith.constant 0 : i32
    %c0_i32_0 = arith.constant 0 : i32
    %c0_i32_1 = arith.constant 0 : i32
    return %c0_i32, %c0_i32_0 : i32, i32
  }
  func.func @transform_3(%arg0: i32) -> (i32, i32) {
    %c0_i32 = arith.constant 0 : i32
    %c0_i32_0 = arith.constant 0 : i32
    %c0_i32_1 = arith.constant 0 : i32
    return %c0_i32, %c0_i32_0 : i32, i32
  }
  func.func @transform_4(%arg0: i32) -> (i32, i32) {
    %c0_i32 = arith.constant 0 : i32
    %c0_i32_0 = arith.constant 0 : i32
    %c0_i32_1 = arith.constant 0 : i32
    return %c0_i32, %c0_i32_0 : i32, i32
  }
  func.func @transform_5(%arg0: i32) -> (i32, i32) {
    %c0_i32 = arith.constant 0 : i32
    %c0_i32_0 = arith.constant 0 : i32
    %c0_i32_1 = arith.constant 0 : i32
    return %c0_i32, %c0_i32_0 : i32, i32
  }
  func.func @transform_6(%arg0: i32) -> (i32, i32) {
    %c0_i32 = arith.constant 0 : i32
    %c0_i32_0 = arith.constant 0 : i32
    %c0_i32_1 = arith.constant 0 : i32
    return %c0_i32, %c0_i32_0 : i32, i32
  }
  func.func @transform_7(%arg0: i32) -> (i32, i32) {
    %c0_i32 = arith.constant 0 : i32
    %c0_i32_0 = arith.constant 0 : i32
    %c0_i32_1 = arith.constant 0 : i32
    return %c0_i32, %c0_i32_0 : i32, i32
  }
  func.func @transform_8(%arg0: i32) -> (i32, i32) {
    %c0_i32 = arith.constant 0 : i32
    %c0_i32_0 = arith.constant 0 : i32
    %c0_i32_1 = arith.constant 0 : i32
    return %c0_i32, %c0_i32_0 : i32, i32
  }
  func.func @transform_9(%arg0: i32) -> (i32, i32) {
    %c0_i32 = arith.constant 0 : i32
    %c0_i32_0 = arith.constant 0 : i32
    %c0_i32_1 = arith.constant 0 : i32
    return %c0_i32, %c0_i32_0 : i32, i32
  }
  func.func @transform_10(%arg0: i32) -> (i32, i32) {
    %c0_i32 = arith.constant 0 : i32
    %c0_i32_0 = arith.constant 0 : i32
    %c0_i32_1 = arith.constant 0 : i32
    return %c0_i32, %c0_i32_0 : i32, i32
  }
  func.func @transform_11(%arg0: i32) -> (i32, i32) {
    %c0_i32 = arith.constant 0 : i32
    %c0_i32_0 = arith.constant 0 : i32
    %c0_i32_1 = arith.constant 0 : i32
    return %c0_i32, %c0_i32_0 : i32, i32
  }
  func.func @transform_12(%arg0: i32) -> (i32, i32) {
    %c0_i32 = arith.constant 0 : i32
    %c0_i32_0 = arith.constant 0 : i32
    return %arg0, %c0_i32 : i32, i32
  }
}

</mosaic_0001>

<llo_original>
// kernel: tpu_custom_call.1
$region0: #{tpu_custom_call.1}
  #allocation0 [shape = 'u32[]', space=smem, size = 0x4, offset = 0x4, fixed_abs, tag = 'smem constant byte address 0x4 - core index']
  #allocation1 [shape = 'u32[144,128]{1,0:T(1,128)}', space=vmem, size = 0x12000, scoped, tag = 'internal scratch']
  %s0 = inlined_call_operand.hbm [shape: f32[32,384], index: 0, kind: input, shape index: {}]
  %s1 = inlined_call_operand.hbm [shape: f32[32,32], index: 1, kind: input, shape index: {}]
  %s2 = inlined_call_operand.hbm [shape: f32[32,1], index: 2, kind: input, shape index: {}]
  %s3 = inlined_call_operand.hbm [shape: f32[3,32], index: 3, kind: input, shape index: {}]
  %s4 = inlined_call_operand.hbm [shape: f32[3,1], index: 4, kind: input, shape index: {}]
  %s5 = inlined_call_operand.hbm [shape: f32[32,3], index: 5, kind: input, shape index: {}]
  %s6 = inlined_call_operand.hbm [shape: f32[32,5], index: 6, kind: input, shape index: {}]
  %s7 = inlined_call_operand.hbm [shape: f32[32,32], index: 7, kind: input, shape index: {}]
  %s8 = inlined_call_operand.hbm [shape: f32[32,1], index: 8, kind: input, shape index: {}]
  %s9 = inlined_call_operand.hbm [shape: f32[128,8], index: 9, kind: input, shape index: {}]
  %s10 = inlined_call_operand.hbm [shape: f32[8,128], index: 10, kind: input, shape index: {}]
  %s11 = inlined_call_operand.hbm [shape: s32[1,128], index: 11, kind: input, shape index: {}]
  %s12 = inlined_call_operand.hbm [shape: f32[24,32], index: 12, kind: output, shape index: {}]
  %s13 = sld [smem:[#allocation0]]
  $region129: #{tpu_custom_call.1} parent=0
    _
  %s15 = ssub.s32 1, %s13
  %s16 = scalar_select 0, %s15, %s13
  $region1: #{tpu_custom_call.1} parent=0
    #allocation2 [shape = 'u8[32768]{0}', space=vmem, size = 0x8000, scoped, tag = 'input window, operand 0']
    #allocation3 [shape = 's32[2]{0}', space=sflag, size = 0x8, scoped, tag = 'scoped memory for tpu_custom_call.1']
    #allocation4 [shape = 's32[2]{0}', space=sflag, size = 0x8, scoped, tag = 'scoped memory for tpu_custom_call.1']
    #allocation5 [shape = 'u8[16384]{0}', space=vmem, size = 0x4000, scoped, tag = 'input window, operand 1, single buffered']
    #allocation6 [shape = 's32[1]{0}', space=sflag, size = 0x4, scoped, tag = 'scoped memory for tpu_custom_call.1']
    #allocation7 [shape = 'u8[16384]{0}', space=vmem, size = 0x4000, scoped, tag = 'input window, operand 2, single buffered']
    #allocation8 [shape = 'u8[2048]{0}', space=vmem, size = 0x800, scoped, tag = 'input window, operand 3, single buffered']
    #allocation9 [shape = 's32[1]{0}', space=sflag, size = 0x4, scoped, tag = 'scoped memory for tpu_custom_call.1']
    #allocation10 [shape = 'u8[2048]{0}', space=vmem, size = 0x800, scoped, tag = 'input window, operand 4, single buffered']
    #allocation11 [shape = 'u8[16384]{0}', space=vmem, size = 0x4000, scoped, tag = 'input window, operand 5, single buffered']
    #allocation12 [shape = 's32[1]{0}', space=sflag, size = 0x4, scoped, tag = 'scoped memory for tpu_custom_call.1']
    #allocation13 [shape = 'u8[16384]{0}', space=vmem, size = 0x4000, scoped, tag = 'input window, operand 6, single buffered']
    #allocation14 [shape = 'u8[16384]{0}', space=vmem, size = 0x4000, scoped, tag = 'input window, operand 7, single buffered']
    #allocation15 [shape = 's32[1]{0}', space=sflag, size = 0x4, scoped, tag = 'scoped memory for tpu_custom_call.1']
    #allocation16 [shape = 'u8[16384]{0}', space=vmem, size = 0x4000, scoped, tag = 'input window, operand 8, single buffered']
    #allocation17 [shape = 'u8[65536]{0}', space=vmem, size = 0x10000, scoped, tag = 'input window, operand 9, single buffered']
    #allocation18 [shape = 's32[1]{0}', space=sflag, size = 0x4, scoped, tag = 'scoped memory for tpu_custom_call.1']
    #allocation19 [shape = 'u8[4096]{0}', space=vmem, size = 0x1000, scoped, tag = 'input window, operand 10, single buffered']
    #allocation20 [shape = 'u8[512]{0}', space=vmem, size = 0x400, scoped, tag = 'input window, operand 11, single buffered']
    #allocation21 [shape = 's32[1]{0}', space=sflag, size = 0x4, scoped, tag = 'scoped memory for tpu_custom_call.1']
    #allocation22 [shape = 'u8[8192]{0}', space=vmem, size = 0x2000, scoped, tag = 'output window, operand 0']
    %17 = vsyncpa [#allocation3], 0
    %s18 = scalar_lea.sflag [#allocation3], 1
    %19 = vsyncpa %s18, 0
    %20 = vsyncpa [#allocation6], 0
    %21 = vsyncpa [#allocation9], 0
    %22 = vsyncpa [#allocation12], 0
    %23 = vsyncpa [#allocation15], 0
    %24 = vsyncpa [#allocation18], 0
    %25 = vsyncpa [#allocation21], 0
    %26 = vsyncpa [#allocation4], 0
    %s27 = scalar_lea.sflag [#allocation4], 1
    %28 = vsyncpa %s27, 0
    loop: start=0, step=1, limit=5
    $region2: #{tpu_custom_call.1} parent=1 // loop_pre_header
      _
    $region3: #{tpu_custom_call.1} parent=1 // loop_header
      %s30 = sphi 0, %s34
      %p31 = scmp.ge.s32.totalorder %s30, 5
      %s40 = sphi 0, %s42
      %s43 = sphi 0, %s40
      %s44 = sphi 0, %s43
      %s60 = sphi 0, %s44
      %s64 = sphi 0, %s64
      %s66 = sphi 0, %s64
      %s67 = sphi 0, %s66
      %s81 = sphi 0, %s67
      %s85 = sphi 0, %s85
      %s87 = sphi 0, %s85
      %s88 = sphi 0, %s87
      %s102 = sphi 0, %s88
      %s106 = sphi 0, %s106
      %s108 = sphi 0, %s106
      %s109 = sphi 0, %s108
      %s123 = sphi 0, %s109
      %s127 = sphi 0, %s127
      %s129 = sphi 0, %s127
      %s130 = sphi 0, %s129
      %s144 = sphi 0, %s130
      %s148 = sphi 0, %s148
      %s150 = sphi 0, %s148
      %s151 = sphi 0, %s150
      %s165 = sphi 0, %s151
      %s169 = sphi 0, %s169
      %s171 = sphi 0, %s169
      %s172 = sphi 0, %s171
      %s186 = sphi 0, %s172
      %s190 = sphi 0, %s190
      %s192 = sphi 0, %s190
      %s193 = sphi 0, %s192
      %s207 = sphi 0, %s193
      %s211 = sphi 0, %s211
      %s213 = sphi 0, %s211
      %s214 = sphi 0, %s213
      %s228 = sphi 0, %s214
      %s232 = sphi 0, %s232
      %s234 = sphi 0, %s232
      %s235 = sphi 0, %s234
      %s249 = sphi 0, %s235
      %s253 = sphi 0, %s253
      %s255 = sphi 0, %s253
      %s256 = sphi 0, %s255
      %s270 = sphi 0, %s256
      %s274 = sphi 0, %s274
      %s276 = sphi 0, %s274
      %s277 = sphi 0, %s276
      %s291 = sphi 0, %s277
      %s297 = sphi 0, %s299
      %s300 = sphi 0, %s297
      %s301 = sphi 0, %s300
      %s317 = sphi 0, %s301
    $region4: #{tpu_custom_call.1} parent=1 // loop_header_branch
      %33 = sbr.rel (%p31) target = $region8
    $region5: #{tpu_custom_call.1} parent=1 // loop_body
      %s35 = ssub.s32 %s30, 1
      %s36 = ssub.s32 %s30, 2
      %s37 = sadd.s32 %s30, 1
      %s38 = ssub.s32 %s30, %s37
      %p39 = scmp.eq.s32.totalorder %s38, 0
      %s41 = sadd.s32 %s40, 1
      %s42 = scalar_select %p39, %s40, %s41
      %p45 = pneg %p39
      %p46 = scmp.eq.s32.totalorder %s30, 2
      %p47 = por %p45, %p46
      %p48 = scmp.ne.s32.totalorder %s40, %s43
      %p49 = scmp.eq.s32.totalorder %s30, 0
      %p50 = por %p48, %p49
      %p51 = scmp.ne.s32.totalorder %s40, %s43
      %p52 = scmp.eq.s32.totalorder %s35, 2
      %p53 = por %p51, %p52
      %p54 = scmp.ne.s32.totalorder %s43, %s44
      %p55 = scmp.eq.s32.totalorder %s35, 0
      %p56 = por %p54, %p55
      %p57 = scmp.ne.s32.totalorder %s43, %s44
      %p58 = scmp.eq.s32.totalorder %s36, 2
      %p59 = por %p57, %p58
      %p61 = scmp.ne.s32.totalorder %s44, %s60
      %p62 = scmp.eq.s32.totalorder %s36, 0
      %p63 = por %p61, %p62
      %s65 = sadd.s32 %s64, 1
      %p68 = scmp.eq.s32.totalorder %s30, 2
      %p69 = scmp.ne.s32.totalorder %s64, %s66
      %p70 = scmp.eq.s32.totalorder %s30, 0
      %p71 = por %p69, %p70
      %p72 = scmp.ne.s32.totalorder %s64, %s66
      %p73 = scmp.eq.s32.totalorder %s35, 2
      %p74 = por %p72, %p73
      %p75 = scmp.ne.s32.totalorder %s66, %s67
      %p76 = scmp.eq.s32.totalorder %s35, 0
      %p77 = por %p75, %p76
      %p78 = scmp.ne.s32.totalorder %s66, %s67
      %p79 = scmp.eq.s32.totalorder %s36, 2
      %p80 = por %p78, %p79
      %p82 = scmp.ne.s32.totalorder %s67, %s81
      %p83 = scmp.eq.s32.totalorder %s36, 0
      %p84 = por %p82, %p83
      %s86 = sadd.s32 %s85, 1
      %p89 = scmp.eq.s32.totalorder %s30, 2
      %p90 = scmp.ne.s32.totalorder %s85, %s87
      %p91 = scmp.eq.s32.totalorder %s30, 0
      %p92 = por %p90, %p91
      %p93 = scmp.ne.s32.totalorder %s85, %s87
      %p94 = scmp.eq.s32.totalorder %s35, 2
      %p95 = por %p93, %p94
      %p96 = scmp.ne.s32.totalorder %s87, %s88
      %p97 = scmp.eq.s32.totalorder %s35, 0
      %p98 = por %p96, %p97
      %p99 = scmp.ne.s32.totalorder %s87, %s88
      %p100 = scmp.eq.s32.totalorder %s36, 2
      %p101 = por %p99, %p100
      %p103 = scmp.ne.s32.totalorder %s88, %s102
      %p104 = scmp.eq.s32.totalorder %s36, 0
      %p105 = por %p103, %p104
      %s107 = sadd.s32 %s106, 1
      %p110 = scmp.eq.s32.totalorder %s30, 2
      %p111 = scmp.ne.s32.totalorder %s106, %s108
      %p112 = scmp.eq.s32.totalorder %s30, 0
      %p113 = por %p111, %p112
      %p114 = scmp.ne.s32.totalorder %s106, %s108
      %p115 = scmp.eq.s32.totalorder %s35, 2
      %p116 = por %p114, %p115
      %p117 = scmp.ne.s32.totalorder %s108, %s109
      %p118 = scmp.eq.s32.totalorder %s35, 0
      %p119 = por %p117, %p118
      %p120 = scmp.ne.s32.totalorder %s108, %s109
      %p121 = scmp.eq.s32.totalorder %s36, 2
      %p122 = por %p120, %p121
      %p124 = scmp.ne.s32.totalorder %s109, %s123
      %p125 = scmp.eq.s32.totalorder %s36, 0
      %p126 = por %p124, %p125
      %s128 = sadd.s32 %s127, 1
      %p131 = scmp.eq.s32.totalorder %s30, 2
      %p132 = scmp.ne.s32.totalorder %s127, %s129
      %p133 = scmp.eq.s32.totalorder %s30, 0
      %p134 = por %p132, %p133
      %p135 = scmp.ne.s32.totalorder %s127, %s129
      %p136 = scmp.eq.s32.totalorder %s35, 2
      %p137 = por %p135, %p136
      %p138 = scmp.ne.s32.totalorder %s129, %s130
      %p139 = scmp.eq.s32.totalorder %s35, 0
      %p140 = por %p138, %p139
      %p141 = scmp.ne.s32.totalorder %s129, %s130
      %p142 = scmp.eq.s32.totalorder %s36, 2
      %p143 = por %p141, %p142
      %p145 = scmp.ne.s32.totalorder %s130, %s144
      %p146 = scmp.eq.s32.totalorder %s36, 0
      %p147 = por %p145, %p146
      %s149 = sadd.s32 %s148, 1
      %p152 = scmp.eq.s32.totalorder %s30, 2
      %p153 = scmp.ne.s32.totalorder %s148, %s150
      %p154 = scmp.eq.s32.totalorder %s30, 0
      %p155 = por %p153, %p154
      %p156 = scmp.ne.s32.totalorder %s148, %s150
      %p157 = scmp.eq.s32.totalorder %s35, 2
      %p158 = por %p156, %p157
      %p159 = scmp.ne.s32.totalorder %s150, %s151
      %p160 = scmp.eq.s32.totalorder %s35, 0
      %p161 = por %p159, %p160
      %p162 = scmp.ne.s32.totalorder %s150, %s151
      %p163 = scmp.eq.s32.totalorder %s36, 2
      %p164 = por %p162, %p163
      %p166 = scmp.ne.s32.totalorder %s151, %s165
      %p167 = scmp.eq.s32.totalorder %s36, 0
      %p168 = por %p166, %p167
      %s170 = sadd.s32 %s169, 1
      %p173 = scmp.eq.s32.totalorder %s30, 2
      %p174 = scmp.ne.s32.totalorder %s169, %s171
      %p175 = scmp.eq.s32.totalorder %s30, 0
      %p176 = por %p174, %p175
      %p177 = scmp.ne.s32.totalorder %s169, %s171
      %p178 = scmp.eq.s32.totalorder %s35, 2
      %p179 = por %p177, %p178
      %p180 = scmp.ne.s32.totalorder %s171, %s172
      %p181 = scmp.eq.s32.totalorder %s35, 0
      %p182 = por %p180, %p181
      %p183 = scmp.ne.s32.totalorder %s171, %s172
      %p184 = scmp.eq.s32.totalorder %s36, 2
      %p185 = por %p183, %p184
      %p187 = scmp.ne.s32.totalorder %s172, %s186
      %p188 = scmp.eq.s32.totalorder %s36, 0
      %p189 = por %p187, %p188
      %s191 = sadd.s32 %s190, 1
      %p194 = scmp.eq.s32.totalorder %s30, 2
      %p195 = scmp.ne.s32.totalorder %s190, %s192
      %p196 = scmp.eq.s32.totalorder %s30, 0
      %p197 = por %p195, %p196
      %p198 = scmp.ne.s32.totalorder %s190, %s192
      %p199 = scmp.eq.s32.totalorder %s35, 2
      %p200 = por %p198, %p199
      %p201 = scmp.ne.s32.totalorder %s192, %s193
      %p202 = scmp.eq.s32.totalorder %s35, 0
      %p203 = por %p201, %p202
      %p204 = scmp.ne.s32.totalorder %s192, %s193
      %p205 = scmp.eq.s32.totalorder %s36, 2
      %p206 = por %p204, %p205
      %p208 = scmp.ne.s32.totalorder %s193, %s207
      %p209 = scmp.eq.s32.totalorder %s36, 0
      %p210 = por %p208, %p209
      %s212 = sadd.s32 %s211, 1
      %p215 = scmp.eq.s32.totalorder %s30, 2
      %p216 = scmp.ne.s32.totalorder %s211, %s213
      %p217 = scmp.eq.s32.totalorder %s30, 0
      %p218 = por %p216, %p217
      %p219 = scmp.ne.s32.totalorder %s211, %s213
      %p220 = scmp.eq.s32.totalorder %s35, 2
      %p221 = por %p219, %p220
      %p222 = scmp.ne.s32.totalorder %s213, %s214
      %p223 = scmp.eq.s32.totalorder %s35, 0
      %p224 = por %p222, %p223
      %p225 = scmp.ne.s32.totalorder %s213, %s214
      %p226 = scmp.eq.s32.totalorder %s36, 2
      %p227 = por %p225, %p226
      %p229 = scmp.ne.s32.totalorder %s214, %s228
      %p230 = scmp.eq.s32.totalorder %s36, 0
      %p231 = por %p229, %p230
      %s233 = sadd.s32 %s232, 1
      %p236 = scmp.eq.s32.totalorder %s30, 2
      %p237 = scmp.ne.s32.totalorder %s232, %s234
      %p238 = scmp.eq.s32.totalorder %s30, 0
      %p239 = por %p237, %p238
      %p240 = scmp.ne.s32.totalorder %s232, %s234
      %p241 = scmp.eq.s32.totalorder %s35, 2
      %p242 = por %p240, %p241
      %p243 = scmp.ne.s32.totalorder %s234, %s235
      %p244 = scmp.eq.s32.totalorder %s35, 0
      %p245 = por %p243, %p244
      %p246 = scmp.ne.s32.totalorder %s234, %s235
      %p247 = scmp.eq.s32.totalorder %s36, 2
      %p248 = por %p246, %p247
      %p250 = scmp.ne.s32.totalorder %s235, %s249
      %p251 = scmp.eq.s32.totalorder %s36, 0
      %p252 = por %p250, %p251
      %s254 = sadd.s32 %s253, 1
      %p257 = scmp.eq.s32.totalorder %s30, 2
      %p258 = scmp.ne.s32.totalorder %s253, %s255
      %p259 = scmp.eq.s32.totalorder %s30, 0
      %p260 = por %p258, %p259
      %p261 = scmp.ne.s32.totalorder %s253, %s255
      %p262 = scmp.eq.s32.totalorder %s35, 2
      %p263 = por %p261, %p262
      %p264 = scmp.ne.s32.totalorder %s255, %s256
      %p265 = scmp.eq.s32.totalorder %s35, 0
      %p266 = por %p264, %p265
      %p267 = scmp.ne.s32.totalorder %s255, %s256
      %p268 = scmp.eq.s32.totalorder %s36, 2
      %p269 = por %p267, %p268
      %p271 = scmp.ne.s32.totalorder %s256, %s270
      %p272 = scmp.eq.s32.totalorder %s36, 0
      %p273 = por %p271, %p272
      %s275 = sadd.s32 %s274, 1
      %p278 = scmp.eq.s32.totalorder %s30, 2
      %p279 = scmp.ne.s32.totalorder %s274, %s276
      %p280 = scmp.eq.s32.totalorder %s30, 0
      %p281 = por %p279, %p280
      %p282 = scmp.ne.s32.totalorder %s274, %s276
      %p283 = scmp.eq.s32.totalorder %s35, 2
      %p284 = por %p282, %p283
      %p285 = scmp.ne.s32.totalorder %s276, %s277
      %p286 = scmp.eq.s32.totalorder %s35, 0
      %p287 = por %p285, %p286
      %p288 = scmp.ne.s32.totalorder %s276, %s277
      %p289 = scmp.eq.s32.totalorder %s36, 2
      %p290 = por %p288, %p289
      %p292 = scmp.ne.s32.totalorder %s277, %s291
      %p293 = scmp.eq.s32.totalorder %s36, 0
      %p294 = por %p292, %p293
      %s295 = ssub.s32 %s30, %s37
      %p296 = scmp.eq.s32.totalorder %s295, 0
      %s298 = sadd.s32 %s297, 1
      %s299 = scalar_select %p296, %s297, %s298
      %p302 = pneg %p296
      %p303 = scmp.eq.s32.totalorder %s30, 2
      %p304 = por %p302, %p303
      %p305 = scmp.ne.s32.totalorder %s297, %s300
      %p306 = scmp.eq.s32.totalorder %s30, 0
      %p307 = por %p305, %p306
      %p308 = scmp.ne.s32.totalorder %s297, %s300
      %p309 = scmp.eq.s32.totalorder %s35, 2
      %p310 = por %p308, %p309
      %p311 = scmp.ne.s32.totalorder %s300, %s301
      %p312 = scmp.eq.s32.totalorder %s35, 0
      %p313 = por %p311, %p312
      %p314 = scmp.ne.s32.totalorder %s300, %s301
      %p315 = scmp.eq.s32.totalorder %s36, 2
      %p316 = por %p314, %p315
      %p318 = scmp.ne.s32.totalorder %s301, %s317
      %p319 = scmp.eq.s32.totalorder %s36, 0
      %p320 = por %p318, %p319
      %p321 = scmp.le.s32.totalorder 1, %s30
      %p322 = scmp.lt.s32.totalorder %s30, 4
      %p323 = pnand %p321, %p322
      %p324 = pneg %p323
      // Predicated region
      $region9: #{tpu_custom_call.1} parent=5 // pred_check
        _
      $region10: #{tpu_custom_call.1} parent=5 // pred_check_branch
        %326 = sbr.rel (%p323) target = $region12
      $region11: #{tpu_custom_call.1} parent=5 // pred_region
        %s327 = ssub.s32 %s30, 1
        // Predicated region
        $region13: #{tpu_custom_call.1} parent=11 // pred_check
          %p328 = pneg %p77
        $region14: #{tpu_custom_call.1} parent=11 // pred_check_branch
          %330 = sbr.rel (%p328) target = $region16
        $region15: #{tpu_custom_call.1} parent=11 // pred_region
          %s332 = ssub.s32 512, 512
          %333 = vsyncadd [#allocation6], %s332
          %s334 = sshll.u32 [#allocation5], 4
          %s335 = int_to_ptr.vmem [resolvable:$true] %s334
          %340 = dma.hbm_to_vmem [thread:$0]  %s1, 512, %s335, [#allocation6], 128, 128, 8
        $region16: #{tpu_custom_call.1} parent=11 // pred_fallthru
          _
        // Predicated region
        $region17: #{tpu_custom_call.1} parent=11 // pred_check
          %p341 = pneg %p98
        $region18: #{tpu_custom_call.1} parent=11 // pred_check_branch
          %343 = sbr.rel (%p341) target = $region20
        $region19: #{tpu_custom_call.1} parent=11 // pred_region
          %s345 = ssub.s32 512, 512
          %346 = vsyncadd [#allocation6], %s345
          %s347 = sshll.u32 [#allocation7], 4
          %s348 = int_to_ptr.vmem [resolvable:$true] %s347
          %353 = dma.hbm_to_vmem [thread:$0]  %s2, 512, %s348, [#allocation6], 128, 128, 8
        $region20: #{tpu_custom_call.1} parent=11 // pred_fallthru
          _
        // Predicated region
        $region21: #{tpu_custom_call.1} parent=11 // pred_check
          %p354 = pneg %p119
        $region22: #{tpu_custom_call.1} parent=11 // pred_check_branch
          %356 = sbr.rel (%p354) target = $region24
        $region23: #{tpu_custom_call.1} parent=11 // pred_region
          %s358 = ssub.s32 64, 64
          %359 = vsyncadd [#allocation9], %s358
          %s361 = sshll.u32 [#allocation8], 4
          %s362 = int_to_ptr.vmem [resolvable:$true] %s361
          %364 = dma.hbm_to_vmem [thread:$0]  %s3, 64, %s362, [#allocation9]
        $region24: #{tpu_custom_call.1} parent=11 // pred_fallthru
          _
        // Predicated region
        $region25: #{tpu_custom_call.1} parent=11 // pred_check
          %p365 = pneg %p140
        $region26: #{tpu_custom_call.1} parent=11 // pred_check_branch
          %367 = sbr.rel (%p365) target = $region28
        $region27: #{tpu_custom_call.1} parent=11 // pred_region
          %s369 = ssub.s32 64, 64
          %370 = vsyncadd [#allocation9], %s369
          %s372 = sshll.u32 [#allocation10], 4
          %s373 = int_to_ptr.vmem [resolvable:$true] %s372
          %375 = dma.hbm_to_vmem [thread:$0]  %s4, 64, %s373, [#allocation9]
        $region28: #{tpu_custom_call.1} parent=11 // pred_fallthru
          _
        // Predicated region
        $region29: #{tpu_custom_call.1} parent=11 // pred_check
          %p376 = pneg %p161
        $region30: #{tpu_custom_call.1} parent=11 // pred_check_branch
          %378 = sbr.rel (%p376) target = $region32
        $region31: #{tpu_custom_call.1} parent=11 // pred_region
          %s380 = ssub.s32 512, 512
          %381 = vsyncadd [#allocation12], %s380
          %s382 = sshll.u32 [#allocation11], 4
          %s383 = int_to_ptr.vmem [resolvable:$true] %s382
          %388 = dma.hbm_to_vmem [thread:$0]  %s5, 512, %s383, [#allocation12], 128, 128, 8
        $region32: #{tpu_custom_call.1} parent=11 // pred_fallthru
          _
        // Predicated region
        $region33: #{tpu_custom_call.1} parent=11 // pred_check
          %p389 = pneg %p182
        $region34: #{tpu_custom_call.1} parent=11 // pred_check_branch
          %391 = sbr.rel (%p389) target = $region36
        $region35: #{tpu_custom_call.1} parent=11 // pred_region
          %s393 = ssub.s32 512, 512
          %394 = vsyncadd [#allocation12], %s393
          %s395 = sshll.u32 [#allocation13], 4
          %s396 = int_to_ptr.vmem [resolvable:$true] %s395
          %401 = dma.hbm_to_vmem [thread:$0]  %s6, 512, %s396, [#allocation12], 128, 128, 8
        $region36: #{tpu_custom_call.1} parent=11 // pred_fallthru
          _
        // Predicated region
        $region37: #{tpu_custom_call.1} parent=11 // pred_check
          %p402 = pneg %p203
        $region38: #{tpu_custom_call.1} parent=11 // pred_check_branch
          %404 = sbr.rel (%p402) target = $region40
        $region39: #{tpu_custom_call.1} parent=11 // pred_region
          %s406 = ssub.s32 512, 512
          %407 = vsyncadd [#allocation15], %s406
          %s408 = sshll.u32 [#allocation14], 4
          %s409 = int_to_ptr.vmem [resolvable:$true] %s408
          %414 = dma.hbm_to_vmem [thread:$0]  %s7, 512, %s409, [#allocation15], 128, 128, 8
        $region40: #{tpu_custom_call.1} parent=11 // pred_fallthru
          _
        // Predicated region
        $region41: #{tpu_custom_call.1} parent=11 // pred_check
          %p415 = pneg %p224
        $region42: #{tpu_custom_call.1} parent=11 // pred_check_branch
          %417 = sbr.rel (%p415) target = $region44
        $region43: #{tpu_custom_call.1} parent=11 // pred_region
          %s419 = ssub.s32 512, 512
          %420 = vsyncadd [#allocation15], %s419
          %s421 = sshll.u32 [#allocation16], 4
          %s422 = int_to_ptr.vmem [resolvable:$true] %s421
          %427 = dma.hbm_to_vmem [thread:$0]  %s8, 512, %s422, [#allocation15], 128, 128, 8
        $region44: #{tpu_custom_call.1} parent=11 // pred_fallthru
          _
        // Predicated region
        $region45: #{tpu_custom_call.1} parent=11 // pred_check
          %p428 = pneg %p245
        $region46: #{tpu_custom_call.1} parent=11 // pred_check_branch
          %430 = sbr.rel (%p428) target = $region48
        $region47: #{tpu_custom_call.1} parent=11 // pred_region
          %s432 = ssub.s32 2048, 2048
          %433 = vsyncadd [#allocation18], %s432
          %s434 = sshll.u32 [#allocation17], 4
          %s435 = int_to_ptr.vmem [resolvable:$true] %s434
          %440 = dma.hbm_to_vmem [thread:$0]  %s9, 2048, %s435, [#allocation18], 128, 128, 8
        $region48: #{tpu_custom_call.1} parent=11 // pred_fallthru
          _
        // Predicated region
        $region49: #{tpu_custom_call.1} parent=11 // pred_check
          %p441 = pneg %p266
        $region50: #{tpu_custom_call.1} parent=11 // pred_check_branch
          %443 = sbr.rel (%p441) target = $region52
        $region51: #{tpu_custom_call.1} parent=11 // pred_region
          %s445 = ssub.s32 128, 128
          %446 = vsyncadd [#allocation18], %s445
          %s448 = sshll.u32 [#allocation19], 4
          %s449 = int_to_ptr.vmem [resolvable:$true] %s448
          %451 = dma.hbm_to_vmem [thread:$0]  %s10, 128, %s449, [#allocation18]
        $region52: #{tpu_custom_call.1} parent=11 // pred_fallthru
          _
        // Predicated region
        $region53: #{tpu_custom_call.1} parent=11 // pred_check
          %p452 = pneg %p287
        $region54: #{tpu_custom_call.1} parent=11 // pred_check_branch
          %454 = sbr.rel (%p452) target = $region56
        $region55: #{tpu_custom_call.1} parent=11 // pred_region
          %s456 = ssub.s32 16, 16
          %457 = vsyncadd [#allocation21], %s456
          %s459 = sshll.u32 [#allocation20], 4
          %s460 = int_to_ptr.vmem [resolvable:$true] %s459
          %462 = dma.hbm_to_vmem [thread:$0]  %s11, 16, %s460, [#allocation21]
        $region56: #{tpu_custom_call.1} parent=11 // pred_fallthru
          _
      $region12: #{tpu_custom_call.1} parent=5 // pred_fallthru
        _
      %p463 = scmp.lt.s32.totalorder %s30, 3
      // Predicated region
      $region57: #{tpu_custom_call.1} parent=5 // pred_check
        %p464 = pneg %p463
      $region58: #{tpu_custom_call.1} parent=5 // pred_check_branch
        %466 = sbr.rel (%p464) target = $region60
      $region59: #{tpu_custom_call.1} parent=5 // pred_region
        // Predicated region
        $region61: #{tpu_custom_call.1} parent=59 // pred_check
          %p467 = pneg %p50
        $region62: #{tpu_custom_call.1} parent=59 // pred_check_branch
          %469 = sbr.rel (%p467) target = $region64
        $region63: #{tpu_custom_call.1} parent=59 // pred_region
          %s470 = sand.u32 %s40, 1
          %s471 = scalar_lea.sflag [#allocation3], %s470
          %s472 = sand.u32 %s40, 1
          %s473 = smul.addr %s472, 32
          %s474 = scalar_lea.vmem [#allocation2], %s473
          %s476 = ssub.s32 512, 512
          %477 = vsyncadd %s471, %s476
          %s478 = smul.addr %s30, 128
          %s479 = scalar_lea.hbm %s0, %s478
          %s480 = sshll.u32 %s474, 4
          %s481 = int_to_ptr.vmem [resolvable:$true] %s480
          %486 = dma.hbm_to_vmem [thread:$0]  %s479, 512, %s481, %s471, 384, 128, 8
        $region64: #{tpu_custom_call.1} parent=59 // pred_fallthru
          _
      $region60: #{tpu_custom_call.1} parent=5 // pred_fallthru
        _
      %p487 = scmp.le.s32.totalorder 1, %s30
      %p488 = scmp.lt.s32.totalorder %s30, 4
      %p489 = pnand %p487, %p488
      %p490 = pneg %p489
      // Predicated region
      $region65: #{tpu_custom_call.1} parent=5 // pred_check
        _
      $region66: #{tpu_custom_call.1} parent=5 // pred_check_branch
        %492 = sbr.rel (%p489) target = $region68
      $region67: #{tpu_custom_call.1} parent=5 // pred_region
        %s493 = ssub.s32 %s30, 1
        %s494 = sand.u32 %s43, 1
        %s495 = scalar_lea.sflag [#allocation3], %s494
        %s496 = sand.u32 %s43, 1
        %s497 = smul.addr %s496, 32
        %s498 = scalar_lea.vmem [#allocation2], %s497
        // Predicated region
        $region69: #{tpu_custom_call.1} parent=67 // pred_check
          %p499 = pneg %p56
        $region70: #{tpu_custom_call.1} parent=67 // pred_check_branch
          %501 = sbr.rel (%p499) target = $region72
        $region71: #{tpu_custom_call.1} parent=67 // pred_region
          %502 = dma.done %s495, 512
        $region72: #{tpu_custom_call.1} parent=67 // pred_fallthru
          _
        // Predicated region
        $region73: #{tpu_custom_call.1} parent=67 // pred_check
          %p503 = pneg %p77
        $region74: #{tpu_custom_call.1} parent=67 // pred_check_branch
          %505 = sbr.rel (%p503) target = $region76
        $region75: #{tpu_custom_call.1} parent=67 // pred_region
          %506 = dma.done [#allocation6], 512
        $region76: #{tpu_custom_call.1} parent=67 // pred_fallthru
          _
        // Predicated region
        $region77: #{tpu_custom_call.1} parent=67 // pred_check
          %p507 = pneg %p98
        $region78: #{tpu_custom_call.1} parent=67 // pred_check_branch
          %509 = sbr.rel (%p507) target = $region80
        $region79: #{tpu_custom_call.1} parent=67 // pred_region
          %510 = dma.done [#allocation6], 512
        $region80: #{tpu_custom_call.1} parent=67 // pred_fallthru
          _
        // Predicated region
        $region81: #{tpu_custom_call.1} parent=67 // pred_check
          %p511 = pneg %p119
        $region82: #{tpu_custom_call.1} parent=67 // pred_check_branch
          %513 = sbr.rel (%p511) target = $region84
        $region83: #{tpu_custom_call.1} parent=67 // pred_region
          %514 = dma.done [#allocation9], 64
        $region84: #{tpu_custom_call.1} parent=67 // pred_fallthru
          _
        // Predicated region
        $region85: #{tpu_custom_call.1} parent=67 // pred_check
          %p515 = pneg %p140
        $region86: #{tpu_custom_call.1} parent=67 // pred_check_branch
          %517 = sbr.rel (%p515) target = $region88
        $region87: #{tpu_custom_call.1} parent=67 // pred_region
          %518 = dma.done [#allocation9], 64
        $region88: #{tpu_custom_call.1} parent=67 // pred_fallthru
          _
        // Predicated region
        $region89: #{tpu_custom_call.1} parent=67 // pred_check
          %p519 = pneg %p161
        $region90: #{tpu_custom_call.1} parent=67 // pred_check_branch
          %521 = sbr.rel (%p519) target = $region92
        $region91: #{tpu_custom_call.1} parent=67 // pred_region
          %522 = dma.done [#allocation12], 512
        $region92: #{tpu_custom_call.1} parent=67 // pred_fallthru
          _
        // Predicated region
        $region93: #{tpu_custom_call.1} parent=67 // pred_check
          %p523 = pneg %p182
        $region94: #{tpu_custom_call.1} parent=67 // pred_check_branch
          %525 = sbr.rel (%p523) target = $region96
        $region95: #{tpu_custom_call.1} parent=67 // pred_region
          %526 = dma.done [#allocation12], 512
        $region96: #{tpu_custom_call.1} parent=67 // pred_fallthru
          _
        // Predicated region
        $region97: #{tpu_custom_call.1} parent=67 // pred_check
          %p527 = pneg %p203
        $region98: #{tpu_custom_call.1} parent=67 // pred_check_branch
          %529 = sbr.rel (%p527) target = $region100
        $region99: #{tpu_custom_call.1} parent=67 // pred_region
          %530 = dma.done [#allocation15], 512
        $region100: #{tpu_custom_call.1} parent=67 // pred_fallthru
          _
        // Predicated region
        $region101: #{tpu_custom_call.1} parent=67 // pred_check
          %p531 = pneg %p224
        $region102: #{tpu_custom_call.1} parent=67 // pred_check_branch
          %533 = sbr.rel (%p531) target = $region104
        $region103: #{tpu_custom_call.1} parent=67 // pred_region
          %534 = dma.done [#allocation15], 512
        $region104: #{tpu_custom_call.1} parent=67 // pred_fallthru
          _
        // Predicated region
        $region105: #{tpu_custom_call.1} parent=67 // pred_check
          %p535 = pneg %p245
        $region106: #{tpu_custom_call.1} parent=67 // pred_check_branch
          %537 = sbr.rel (%p535) target = $region108
        $region107: #{tpu_custom_call.1} parent=67 // pred_region
          %538 = dma.done [#allocation18], 2048
        $region108: #{tpu_custom_call.1} parent=67 // pred_fallthru
          _
        // Predicated region
        $region109: #{tpu_custom_call.1} parent=67 // pred_check
          %p539 = pneg %p266
        $region110: #{tpu_custom_call.1} parent=67 // pred_check_branch
          %541 = sbr.rel (%p539) target = $region112
        $region111: #{tpu_custom_call.1} parent=67 // pred_region
          %542 = dma.done [#allocation18], 128
        $region112: #{tpu_custom_call.1} parent=67 // pred_fallthru
          _
        // Predicated region
        $region113: #{tpu_custom_call.1} parent=67 // pred_check
          %p543 = pneg %p287
        $region114: #{tpu_custom_call.1} parent=67 // pred_check_branch
          %545 = sbr.rel (%p543) target = $region116
        $region115: #{tpu_custom_call.1} parent=67 // pred_region
          %546 = dma.done [#allocation21], 16
        $region116: #{tpu_custom_call.1} parent=67 // pred_fallthru
          _
        %s547 = sand.u32 %s43, 1
        %s548 = scalar_lea.sflag [#allocation3], %s547
        %s549 = sand.u32 %s43, 1
        %s550 = smul.addr %s549, 32
        %s551 = scalar_lea.vmem [#allocation2], %s550
        %p552 = pneg %p56
        %p553 = pneg %p53
        %p554 = pneg %p77
        %p555 = pneg %p74
        %p556 = pneg %p98
        %p557 = pneg %p95
        %p558 = pneg %p119
        %p559 = pneg %p116
        %p560 = pneg %p140
        %p561 = pneg %p137
        %p562 = pneg %p161
        %p563 = pneg %p158
        %p564 = pneg %p182
        %p565 = pneg %p179
        %p566 = pneg %p203
        %p567 = pneg %p200
        %p568 = pneg %p224
        %p569 = pneg %p221
        %p570 = pneg %p245
        %p571 = pneg %p242
        %p572 = pneg %p266
        %p573 = pneg %p263
        %p574 = pneg %p287
        %p575 = pneg %p284
        %p576 = pneg %p313
        %p577 = pneg %p310
        %s578 = sand.u32 %s300, 1
        %s579 = scalar_lea.sflag [#allocation4], %s578
        %s580 = sand.u32 %s300, 1
        %s581 = smul.addr %s580, 8
        %s582 = scalar_lea.vmem [#allocation22], %s581
        %v583 = vld [vmem:[%s498] sm:$0xff]
        %v584 = vld [vmem:[%s498 + $0x8] sm:$0xff]
        %v585 = vld [vmem:[%s498 + $0x10] sm:$0xff]
        %v586 = vld [vmem:[%s498 + $0x18] sm:$0xff]
        %v587 = vld [vmem:[#allocation20] sm:$0x1]
        %v588 = vld [vmem:[#allocation17] sm:$0xff]
        %v589 = vld [vmem:[#allocation17 + $0x8] sm:$0xff]
        %v590 = vld [vmem:[#allocation17 + $0x10] sm:$0xff]
        %v591 = vld [vmem:[#allocation17 + $0x18] sm:$0xff]
        %v592 = vld [vmem:[#allocation17 + $0x20] sm:$0xff]
        %v593 = vld [vmem:[#allocation17 + $0x28] sm:$0xff]
        %v594 = vld [vmem:[#allocation17 + $0x30] sm:$0xff]
        %v595 = vld [vmem:[#allocation17 + $0x38] sm:$0xff]
        %v596 = vld [vmem:[#allocation17 + $0x40] sm:$0xff]
        %v597 = vld [vmem:[#allocation17 + $0x48] sm:$0xff]
        %v598 = vld [vmem:[#allocation17 + $0x50] sm:$0xff]
        %v599 = vld [vmem:[#allocation17 + $0x58] sm:$0xff]
        %v600 = vld [vmem:[#allocation17 + $0x60] sm:$0xff]
        %v601 = vld [vmem:[#allocation17 + $0x68] sm:$0xff]
        %v602 = vld [vmem:[#allocation17 + $0x70] sm:$0xff]
        %v603 = vld [vmem:[#allocation17 + $0x78] sm:$0xff]
        %v604 = vld [vmem:[#allocation19] sm:$0xff]
        %v605 = vld [vmem:[#allocation5] sm:$0xff]
        %v606 = vld [vmem:[#allocation5 + $0x8] sm:$0xff]
        %v607 = vld [vmem:[#allocation5 + $0x10] sm:$0xff]
        %v608 = vld [vmem:[#allocation5 + $0x18] sm:$0xff]
        %v609 = vld [vmem:[#allocation7] sm:$0xff]
        %v610 = vld [vmem:[#allocation7 + $0x8] sm:$0xff]
        %v611 = vld [vmem:[#allocation7 + $0x10] sm:$0xff]
        %v612 = vld [vmem:[#allocation7 + $0x18] sm:$0xff]
        %614 = vset.pattern.permute.xlu0 0
        %615 = vperm.xlu0 %614, %v609
        %v616 = vpop.permute.xlu0 %615
        %619 = vset.pattern.permute.xlu0 0
        %620 = vperm.xlu0 %619, %v610
        %v621 = vpop.permute.xlu0 %620
        %624 = vset.pattern.permute.xlu0 0
        %625 = vperm.xlu0 %624, %v611
        %v626 = vpop.permute.xlu0 %625
        %629 = vset.pattern.permute.xlu0 0
        %630 = vperm.xlu0 %629, %v612
        %v631 = vpop.permute.xlu0 %630
        %vm633 = vcmask 261120
        %v635 = vsel %vm633, %v605, 0
        %v638 = vsel %vm633, %v606, 0
        %v641 = vsel %vm633, %v607, 0
        %v644 = vsel %vm633, %v608, 0
        %646 = vmatprep.subr.mxu0 0.0
        %647 = vmatpush1.msra.mxu0 %v583
        %648 = vmatprep.subr.mxu0 0.0
        %649 = vmatpush1.msra.mxu0 %v584
        %650 = vmatprep.subr.mxu0 0.0
        %651 = vmatpush1.msra.mxu0 %v585
        %652 = vmatprep.subr.mxu0 0.0
        %653 = vmatpush1.msra.mxu0 %v586
        %654 = vmatprep.subr.mxu0 0.0
        %655 = vmatpush1.msra.mxu0 0.0
        %656 = vmatprep.subr.mxu0 0.0
        %657 = vmatpush1.msra.mxu0 0.0
        %658 = vmatprep.subr.mxu0 0.0
        %659 = vmatpush1.msra.mxu0 0.0
        %660 = vmatprep.subr.mxu0 0.0
        %661 = vmatpush1.msra.mxu0 0.0
        %662 = vmatprep.subr.mxu0 0.0
        %663 = vmatpush1.msra.mxu0 0.0
        %664 = vmatprep.subr.mxu0 0.0
        %665 = vmatpush1.msra.mxu0 0.0
        %666 = vmatprep.subr.mxu0 0.0
        %667 = vmatpush1.msra.mxu0 0.0
        %668 = vmatprep.subr.mxu0 0.0
        %669 = vmatpush1.msra.mxu0 0.0
        %670 = vmatprep.subr.mxu0 0.0
        %671 = vmatpush1.msra.mxu0 0.0
        %672 = vmatprep.subr.mxu0 0.0
        %673 = vmatpush1.msra.mxu0 0.0
        %674 = vmatprep.subr.mxu0 0.0
        %675 = vmatpush1.msra.mxu0 0.0
        %676 = vmatprep.subr.mxu0 0.0
        %677 = vmatpush1.msra.mxu0 0.0
        %678 = vmatprep.subr.mxu0 0.0
        %679 = vmatpush1.msra.mxu0 0.0
        %680 = vmatprep.subr.mxu0 0.0
        %681 = vmatpush1.msra.mxu0 0.0
        %682 = vmatprep.subr.mxu0 0.0
        %683 = vmatpush1.msra.mxu0 0.0
        %684 = vmatprep.subr.mxu0 0.0
        %685 = vmatpush1.msra.mxu0 0.0
        %686 = vmatprep.subr.mxu0 0.0
        %687 = vmatpush1.msra.mxu0 0.0
        %688 = vmatprep.subr.mxu0 0.0
        %689 = vmatpush1.msra.mxu0 0.0
        %690 = vmatprep.subr.mxu0 0.0
        %691 = vmatpush1.msra.mxu0 0.0
        %692 = vmatprep.subr.mxu0 0.0
        %693 = vmatpush1.msra.mxu0 0.0
        %694 = vmatprep.subr.mxu0 0.0
        %695 = vmatpush1.msra.mxu0 0.0
        %696 = vmatprep.subr.mxu0 0.0
        %697 = vmatpush1.msra.mxu0 0.0
        %698 = vmatprep.subr.mxu0 0.0
        %699 = vmatpush1.msra.mxu0 0.0
        %700 = vmatprep.subr.mxu0 0.0
        %701 = vmatpush1.msra.mxu0 0.0
        %702 = vmatprep.subr.mxu0 0.0
        %703 = vmatpush1.msra.mxu0 0.0
        %704 = vmatprep.subr.mxu0 0.0
        %705 = vmatpush1.msra.mxu0 0.0
        %706 = vmatprep.subr.mxu0 0.0
        %707 = vmatpush1.msra.mxu0 0.0
        %708 = vmatprep.subr.mxu0 0.0
        %709 = vmatpush1.msra.mxu0 0.0
        %710 = vmatprep.mubr.f32.mxu0 0.0
        %711 = vmatmul.mubr.f32.gmra.mrb[0].mxu0 %v635
        %v712 = vpop.f32.mrb[0].mxu0
        %v713 = vadd.f32 %v616, %v712
        %v714 = vpop.f32.mrb[0].mxu0
        %715 = vmatprep.mubr.f32.mxu0 0.0
        %716 = vmatmul.mubr.f32.gmra.mrb[0].mxu0 %v638
        %v717 = vpop.f32.mrb[0].mxu0
        %v718 = vadd.f32 %v621, %v717
        %v719 = vpop.f32.mrb[0].mxu0
        %720 = vmatprep.mubr.f32.mxu0 0.0
        %721 = vmatmul.mubr.f32.gmra.mrb[0].mxu0 %v641
        %v722 = vpop.f32.mrb[0].mxu0
        %v723 = vadd.f32 %v626, %v722
        %v724 = vpop.f32.mrb[0].mxu0
        %725 = vmatprep.mubr.f32.mxu0 0.0
        %726 = vmatmul.mubr.f32.gmra.mrb[0].mxu0 %v644
        %v727 = vpop.f32.mrb[0].mxu0
        %v728 = vadd.f32 %v631, %v727
        %v729 = vpop.f32.mrb[0].mxu0
        %730 = vdwg.mxu0
        %731 = vrot.lane.b32.xlu0 %v583, 127
        %v732 = vpop.permute.xlu0 %731
        %733 = vrot.lane.b32.xlu0 %v584, 127
        %v734 = vpop.permute.xlu0 %733
        %735 = vrot.lane.b32.xlu0 %v585, 127
        %v736 = vpop.permute.xlu0 %735
        %737 = vrot.lane.b32.xlu0 %v586, 127
        %v738 = vpop.permute.xlu0 %737
        %v739 = vadd.s32 %v587, 1
        %vm740 = vcmp.lt.s32.totalorder %v739, 16
        %v741 = vmax.f32 %v583, %v732
        %v742 = vmax.f32 %v584, %v734
        %v743 = vmax.f32 %v585, %v736
        %v744 = vmax.f32 %v586, %v738
        %v745 = vsel %vm740, 1, 0
        %v746 = vlaneseq
        %v747 = vshrl.u32 %v746, 7
        %v748 = vsub.s32 0, %v747
        %v749 = vrot.slane %v745, %v748
        %vm750 = vcmp.eq.s32.totalorder %v749, 1
        %v751 = vsel %vm750, %v741, %v583
        %v752 = vsel %vm750, %v742, %v584
        %v753 = vsel %vm750, %v743, %v585
        %v754 = vsel %vm750, %v744, %v586
        %755 = vrot.lane.b32.xlu0 %v751, 1
        %v756 = vpop.permute.xlu0 %755
        %757 = vrot.lane.b32.xlu0 %v752, 1
        %v758 = vpop.permute.xlu0 %757
        %759 = vrot.lane.b32.xlu0 %v753, 1
        %v760 = vpop.permute.xlu0 %759
        %761 = vrot.lane.b32.xlu0 %v754, 1
        %v762 = vpop.permute.xlu0 %761
        %vm763 = vcmp.ge.s32.totalorder %v587, 1
        %v764 = vmax.f32 %v751, %v756
        %v765 = vmax.f32 %v752, %v758
        %v766 = vmax.f32 %v753, %v760
        %v767 = vmax.f32 %v754, %v762
        %v768 = vsel %vm763, 1, 0
        %v769 = vlaneseq
        %v770 = vshrl.u32 %v769, 7
        %v771 = vsub.s32 0, %v770
        %v772 = vrot.slane %v768, %v771
        %vm773 = vcmp.eq.s32.totalorder %v772, 1
        %v774 = vsel %vm773, %v764, %v751
        %v775 = vsel %vm773, %v765, %v752
        %v776 = vsel %vm773, %v766, %v753
        %v777 = vsel %vm773, %v767, %v754
        %778 = vrot.lane.b32.xlu0 %v774, 126
        %v779 = vpop.permute.xlu0 %778
        %780 = vrot.lane.b32.xlu0 %v775, 126
        %v781 = vpop.permute.xlu0 %780
        %782 = vrot.lane.b32.xlu0 %v776, 126
        %v783 = vpop.permute.xlu0 %782
        %784 = vrot.lane.b32.xlu0 %v777, 126
        %v785 = vpop.permute.xlu0 %784
        %v786 = vadd.s32 %v587, 2
        %vm787 = vcmp.lt.s32.totalorder %v786, 16
        %v788 = vmax.f32 %v774, %v779
        %v789 = vmax.f32 %v775, %v781
        %v790 = vmax.f32 %v776, %v783
        %v791 = vmax.f32 %v777, %v785
        %v792 = vsel %vm787, 1, 0
        %v793 = vlaneseq
        %v794 = vshrl.u32 %v793, 7
        %v795 = vsub.s32 0, %v794
        %v796 = vrot.slane %v792, %v795
        %vm797 = vcmp.eq.s32.totalorder %v796, 1
        %v798 = vsel %vm797, %v788, %v774
        %v799 = vsel %vm797, %v789, %v775
        %v800 = vsel %vm797, %v790, %v776
        %v801 = vsel %vm797, %v791, %v777
        %802 = vrot.lane.b32.xlu0 %v798, 2
        %v803 = vpop.permute.xlu0 %802
        %804 = vrot.lane.b32.xlu0 %v799, 2
        %v805 = vpop.permute.xlu0 %804
        %806 = vrot.lane.b32.xlu0 %v800, 2
        %v807 = vpop.permute.xlu0 %806
        %808 = vrot.lane.b32.xlu0 %v801, 2
        %v809 = vpop.permute.xlu0 %808
        %vm810 = vcmp.ge.s32.totalorder %v587, 2
        %v811 = vmax.f32 %v798, %v803
        %v812 = vmax.f32 %v799, %v805
        %v813 = vmax.f32 %v800, %v807
        %v814 = vmax.f32 %v801, %v809
        %v815 = vsel %vm810, 1, 0
        %v816 = vlaneseq
        %v817 = vshrl.u32 %v816, 7
        %v818 = vsub.s32 0, %v817
        %v819 = vrot.slane %v815, %v818
        %vm820 = vcmp.eq.s32.totalorder %v819, 1
        %v821 = vsel %vm820, %v811, %v798
        %v822 = vsel %vm820, %v812, %v799
        %v823 = vsel %vm820, %v813, %v800
        %v824 = vsel %vm820, %v814, %v801
        %825 = vrot.lane.b32.xlu0 %v821, 124
        %v826 = vpop.permute.xlu0 %825
        %827 = vrot.lane.b32.xlu0 %v822, 124
        %v828 = vpop.permute.xlu0 %827
        %829 = vrot.lane.b32.xlu0 %v823, 124
        %v830 = vpop.permute.xlu0 %829
        %831 = vrot.lane.b32.xlu0 %v824, 124
        %v832 = vpop.permute.xlu0 %831
        %v833 = vadd.s32 %v587, 4
        %vm834 = vcmp.lt.s32.totalorder %v833, 16
        %v835 = vmax.f32 %v821, %v826
        %v836 = vmax.f32 %v822, %v828
        %v837 = vmax.f32 %v823, %v830
        %v838 = vmax.f32 %v824, %v832
        %v839 = vsel %vm834, 1, 0
        %v840 = vlaneseq
        %v841 = vshrl.u32 %v840, 7
        %v842 = vsub.s32 0, %v841
        %v843 = vrot.slane %v839, %v842
        %vm844 = vcmp.eq.s32.totalorder %v843, 1
        %v845 = vsel %vm844, %v835, %v821
        %v846 = vsel %vm844, %v836, %v822
        %v847 = vsel %vm844, %v837, %v823
        %v848 = vsel %vm844, %v838, %v824
        %849 = vrot.lane.b32.xlu0 %v845, 4
        %v850 = vpop.permute.xlu0 %849
        %851 = vrot.lane.b32.xlu0 %v846, 4
        %v852 = vpop.permute.xlu0 %851
        %853 = vrot.lane.b32.xlu0 %v847, 4
        %v854 = vpop.permute.xlu0 %853
        %855 = vrot.lane.b32.xlu0 %v848, 4
        %v856 = vpop.permute.xlu0 %855
        %vm857 = vcmp.ge.s32.totalorder %v587, 4
        %v858 = vmax.f32 %v845, %v850
        %v859 = vmax.f32 %v846, %v852
        %v860 = vmax.f32 %v847, %v854
        %v861 = vmax.f32 %v848, %v856
        %v862 = vsel %vm857, 1, 0
        %v863 = vlaneseq
        %v864 = vshrl.u32 %v863, 7
        %v865 = vsub.s32 0, %v864
        %v866 = vrot.slane %v862, %v865
        %vm867 = vcmp.eq.s32.totalorder %v866, 1
        %v868 = vsel %vm867, %v858, %v845
        %v869 = vsel %vm867, %v859, %v846
        %v870 = vsel %vm867, %v860, %v847
        %v871 = vsel %vm867, %v861, %v848
        %872 = vrot.lane.b32.xlu0 %v868, 120
        %v873 = vpop.permute.xlu0 %872
        %874 = vrot.lane.b32.xlu0 %v869, 120
        %v875 = vpop.permute.xlu0 %874
        %876 = vrot.lane.b32.xlu0 %v870, 120
        %v877 = vpop.permute.xlu0 %876
        %878 = vrot.lane.b32.xlu0 %v871, 120
        %v879 = vpop.permute.xlu0 %878
        %v880 = vadd.s32 %v587, 8
        %vm881 = vcmp.lt.s32.totalorder %v880, 16
        %v882 = vmax.f32 %v868, %v873
        %v883 = vmax.f32 %v869, %v875
        %v884 = vmax.f32 %v870, %v877
        %v885 = vmax.f32 %v871, %v879
        %v886 = vsel %vm881, 1, 0
        %v887 = vlaneseq
        %v888 = vshrl.u32 %v887, 7
        %v889 = vsub.s32 0, %v888
        %v890 = vrot.slane %v886, %v889
        %vm891 = vcmp.eq.s32.totalorder %v890, 1
        %v892 = vsel %vm891, %v882, %v868
        %v893 = vsel %vm891, %v883, %v869
        %v894 = vsel %vm891, %v884, %v870
        %v895 = vsel %vm891, %v885, %v871
        %896 = vrot.lane.b32.xlu0 %v892, 8
        %v897 = vpop.permute.xlu0 %896
        %898 = vrot.lane.b32.xlu0 %v893, 8
        %v899 = vpop.permute.xlu0 %898
        %900 = vrot.lane.b32.xlu0 %v894, 8
        %v901 = vpop.permute.xlu0 %900
        %902 = vrot.lane.b32.xlu0 %v895, 8
        %v903 = vpop.permute.xlu0 %902
        %vm904 = vcmp.ge.s32.totalorder %v587, 8
        %v905 = vmax.f32 %v892, %v897
        %v906 = vmax.f32 %v893, %v899
        %v907 = vmax.f32 %v894, %v901
        %v908 = vmax.f32 %v895, %v903
        %v909 = vsel %vm904, 1, 0
        %v910 = vlaneseq
        %v911 = vshrl.u32 %v910, 7
        %v912 = vsub.s32 0, %v911
        %v913 = vrot.slane %v909, %v912
        %vm914 = vcmp.eq.s32.totalorder %v913, 1
        %v915 = vsel %vm914, %v905, %v892
        %v916 = vsel %vm914, %v906, %v893
        %v917 = vsel %vm914, %v907, %v894
        %v918 = vsel %vm914, %v908, %v895
        %v919 = vld [vmem:[#allocation8] sm:$0x7]
        %v920 = vld [vmem:[#allocation10] sm:$0x7]
        %922 = vset.pattern.permute.xlu0 0
        %923 = vperm.xlu0 %922, %v920
        %v924 = vpop.permute.xlu0 %923
        %v927 = vsel %vm633, %v919, 0
        %929 = vmatprep.subr.mxu0 0.0
        %930 = vmatpush1.msra.mxu0 %v915
        %931 = vmatprep.subr.mxu0 0.0
        %932 = vmatpush1.msra.mxu0 %v916
        %933 = vmatprep.subr.mxu0 0.0
        %934 = vmatpush1.msra.mxu0 %v917
        %935 = vmatprep.subr.mxu0 0.0
        %936 = vmatpush1.msra.mxu0 %v918
        %937 = vmatprep.subr.mxu0 0.0
        %938 = vmatpush1.msra.mxu0 0.0
        %939 = vmatprep.subr.mxu0 0.0
        %940 = vmatpush1.msra.mxu0 0.0
        %941 = vmatprep.subr.mxu0 0.0
        %942 = vmatpush1.msra.mxu0 0.0
        %943 = vmatprep.subr.mxu0 0.0
        %944 = vmatpush1.msra.mxu0 0.0
        %945 = vmatprep.subr.mxu0 0.0
        %946 = vmatpush1.msra.mxu0 0.0
        %947 = vmatprep.subr.mxu0 0.0
        %948 = vmatpush1.msra.mxu0 0.0
        %949 = vmatprep.subr.mxu0 0.0
        %950 = vmatpush1.msra.mxu0 0.0
        %951 = vmatprep.subr.mxu0 0.0
        %952 = vmatpush1.msra.mxu0 0.0
        %953 = vmatprep.subr.mxu0 0.0
        %954 = vmatpush1.msra.mxu0 0.0
        %955 = vmatprep.subr.mxu0 0.0
        %956 = vmatpush1.msra.mxu0 0.0
        %957 = vmatprep.subr.mxu0 0.0
        %958 = vmatpush1.msra.mxu0 0.0
        %959 = vmatprep.subr.mxu0 0.0
        %960 = vmatpush1.msra.mxu0 0.0
        %961 = vmatprep.subr.mxu0 0.0
        %962 = vmatpush1.msra.mxu0 0.0
        %963 = vmatprep.subr.mxu0 0.0
        %964 = vmatpush1.msra.mxu0 0.0
        %965 = vmatprep.subr.mxu0 0.0
        %966 = vmatpush1.msra.mxu0 0.0
        %967 = vmatprep.subr.mxu0 0.0
        %968 = vmatpush1.msra.mxu0 0.0
        %969 = vmatprep.subr.mxu0 0.0
        %970 = vmatpush1.msra.mxu0 0.0
        %971 = vmatprep.subr.mxu0 0.0
        %972 = vmatpush1.msra.mxu0 0.0
        %973 = vmatprep.subr.mxu0 0.0
        %974 = vmatpush1.msra.mxu0 0.0
        %975 = vmatprep.subr.mxu0 0.0
        %976 = vmatpush1.msra.mxu0 0.0
        %977 = vmatprep.subr.mxu0 0.0
        %978 = vmatpush1.msra.mxu0 0.0
        %979 = vmatprep.subr.mxu0 0.0
        %980 = vmatpush1.msra.mxu0 0.0
        %981 = vmatprep.subr.mxu0 0.0
        %982 = vmatpush1.msra.mxu0 0.0
        %983 = vmatprep.subr.mxu0 0.0
        %984 = vmatpush1.msra.mxu0 0.0
        %985 = vmatprep.subr.mxu0 0.0
        %986 = vmatpush1.msra.mxu0 0.0
        %987 = vmatprep.subr.mxu0 0.0
        %988 = vmatpush1.msra.mxu0 0.0
        %989 = vmatprep.subr.mxu0 0.0
        %990 = vmatpush1.msra.mxu0 0.0
        %991 = vmatprep.subr.mxu0 0.0
        %992 = vmatpush1.msra.mxu0 0.0
        %993 = vmatprep.mubr.f32.mxu0 0.0
        %994 = vmatmul.mubr.f32.gmra.mrb[0].mxu0 %v927
        %v995 = vpop.f32.mrb[0].mxu0
        %v996 = vadd.f32 %v924, %v995
        %v997 = vpop.f32.mrb[0].mxu0
        %998 = vdwg.mxu0
        %v999 = vld [vmem:[#allocation11] sm:$0xff]
        %v1000 = vld [vmem:[#allocation11 + $0x8] sm:$0xff]
        %v1001 = vld [vmem:[#allocation11 + $0x10] sm:$0xff]
        %v1002 = vld [vmem:[#allocation11 + $0x18] sm:$0xff]
        %1004 = vset.pattern.permute.xlu0 1
        %1005 = vperm.xlu0 %1004, %v999
        %v1006 = vpop.permute.xlu0 %1005
        %1009 = vset.pattern.permute.xlu0 1
        %1010 = vperm.xlu0 %1009, %v1000
        %v1011 = vpop.permute.xlu0 %1010
        %1014 = vset.pattern.permute.xlu0 1
        %1015 = vperm.xlu0 %1014, %v1001
        %v1016 = vpop.permute.xlu0 %1015
        %1019 = vset.pattern.permute.xlu0 1
        %1020 = vperm.xlu0 %1019, %v1002
        %v1021 = vpop.permute.xlu0 %1020
        %v1023 = vmul.f32 %v713, %v1006
        %v1024 = vmul.f32 %v718, %v1011
        %v1025 = vmul.f32 %v723, %v1016
        %v1026 = vmul.f32 %v728, %v1021
        %1027 = vrot.lane.b32.xlu0 %v713, 1
        %v1028 = vpop.permute.xlu0 %1027
        %1029 = vrot.lane.b32.xlu0 %v718, 1
        %v1030 = vpop.permute.xlu0 %1029
        %1031 = vrot.lane.b32.xlu0 %v723, 1
        %v1032 = vpop.permute.xlu0 %1031
        %1033 = vrot.lane.b32.xlu0 %v728, 1
        %v1034 = vpop.permute.xlu0 %1033
        %v1035 = vadd.s32 %v587, 4294967295
        %vm1036 = vcmp.ge.s32.totalorder %v1035, 0
        %vm1037 = vcmp.lt.s32.totalorder %v1035, 16
        %vm1038 = vmand %vm1036, %vm1037
        %v1039 = vsel %vm1038, 1, 0
        %v1040 = vlaneseq
        %v1041 = vshrl.u32 %v1040, 7
        %v1042 = vsub.s32 0, %v1041
        %v1043 = vrot.slane %v1039, %v1042
        %vm1044 = vcmp.eq.s32.totalorder %v1043, 1
        %v1045 = vsel %vm1044, %v1028, 0.0
        %v1046 = vsel %vm1044, %v1030, 0.0
        %v1047 = vsel %vm1044, %v1032, 0.0
        %v1048 = vsel %vm1044, %v1034, 0.0
        %1049 = vset.pattern.permute.xlu0 0
        %1050 = vperm.xlu0 %1049, %v999
        %v1051 = vpop.permute.xlu0 %1050
        %1053 = vset.pattern.permute.xlu0 0
        %1054 = vperm.xlu0 %1053, %v1000
        %v1055 = vpop.permute.xlu0 %1054
        %1057 = vset.pattern.permute.xlu0 0
        %1058 = vperm.xlu0 %1057, %v1001
        %v1059 = vpop.permute.xlu0 %1058
        %1061 = vset.pattern.permute.xlu0 0
        %1062 = vperm.xlu0 %1061, %v1002
        %v1063 = vpop.permute.xlu0 %1062
        %v1065 = vmul.f32 %v1045, %v1051
        %v1066 = vmul.f32 %v1046, %v1055
        %v1067 = vmul.f32 %v1047, %v1059
        %v1068 = vmul.f32 %v1048, %v1063
        %v1069 = vadd.f32 %v1023, %v1065
        %v1070 = vadd.f32 %v1024, %v1066
        %v1071 = vadd.f32 %v1025, %v1067
        %v1072 = vadd.f32 %v1026, %v1068
        %1073 = vrot.lane.b32.xlu0 %v713, 127
        %v1074 = vpop.permute.xlu0 %1073
        %1075 = vrot.lane.b32.xlu0 %v718, 127
        %v1076 = vpop.permute.xlu0 %1075
        %1077 = vrot.lane.b32.xlu0 %v723, 127
        %v1078 = vpop.permute.xlu0 %1077
        %1079 = vrot.lane.b32.xlu0 %v728, 127
        %v1080 = vpop.permute.xlu0 %1079
        %vm1081 = vcmp.ge.s32.totalorder %v739, 0
        %vm1082 = vmand %vm1081, %vm740
        %v1083 = vsel %vm1082, 1, 0
        %v1084 = vlaneseq
        %v1085 = vshrl.u32 %v1084, 7
        %v1086 = vsub.s32 0, %v1085
        %v1087 = vrot.slane %v1083, %v1086
        %vm1088 = vcmp.eq.s32.totalorder %v1087, 1
        %v1089 = vsel %vm1088, %v1074, 0.0
        %v1090 = vsel %vm1088, %v1076, 0.0
        %v1091 = vsel %vm1088, %v1078, 0.0
        %v1092 = vsel %vm1088, %v1080, 0.0
        %1093 = vset.pattern.permute.xlu0 2
        %1094 = vperm.xlu0 %1093, %v999
        %v1095 = vpop.permute.xlu0 %1094
        %1097 = vset.pattern.permute.xlu0 2
        %1098 = vperm.xlu0 %1097, %v1000
        %v1099 = vpop.permute.xlu0 %1098
        %1101 = vset.pattern.permute.xlu0 2
        %1102 = vperm.xlu0 %1101, %v1001
        %v1103 = vpop.permute.xlu0 %1102
        %1105 = vset.pattern.permute.xlu0 2
        %1106 = vperm.xlu0 %1105, %v1002
        %v1107 = vpop.permute.xlu0 %1106
        %v1109 = vmul.f32 %v1089, %v1095
        %v1110 = vmul.f32 %v1090, %v1099
        %v1111 = vmul.f32 %v1091, %v1103
        %v1112 = vmul.f32 %v1092, %v1107
        %v1113 = vadd.f32 %v1069, %v1109
        %v1114 = vadd.f32 %v1070, %v1110
        %v1115 = vadd.f32 %v1071, %v1111
        %v1116 = vadd.f32 %v1072, %v1112
        %v1117 = vmul.f32 %v1113, 0.5
        %v1118 = vmul.f32 %v1114, 0.5
        %v1119 = vmul.f32 %v1115, 0.5
        %v1120 = vmul.f32 %v1116, 0.5
        %v1121 = vmul.f32 %v1113, 0.70710677
        %v1122 = vmul.f32 %v1114, 0.70710677
        %v1123 = vmul.f32 %v1115, 0.70710677
        %v1124 = vmul.f32 %v1116, 0.70710677
        %v1125 = verf.f32.pop %v1121
        %v1126 = verf.f32.pop %v1122
        %v1127 = verf.f32.pop %v1123
        %v1128 = verf.f32.pop %v1124
        %v1129 = vadd.f32 %v1125, 1.0
        %v1130 = vadd.f32 %v1126, 1.0
        %v1131 = vadd.f32 %v1127, 1.0
        %v1132 = vadd.f32 %v1128, 1.0
        %v1133 = vmul.f32 %v1117, %v1129
        %v1134 = vmul.f32 %v1118, %v1130
        %v1135 = vmul.f32 %v1119, %v1131
        %v1136 = vmul.f32 %v1120, %v1132
        %v1137 = vlaneseq
        %v1138 = vshrl.u32 %v1137, 7
        %v1139 = vsub.s32 0, %v1138
        %v1140 = vrot.slane %v996, %v1139
        %v1141 = vmul.f32 %v1133, %v1140
        %v1142 = vmul.f32 %v1134, %v1140
        %v1143 = vmul.f32 %v1135, %v1140
        %v1144 = vmul.f32 %v1136, %v1140
        %v1145 = vld [vmem:[#allocation13] sm:$0xff]
        %v1146 = vld [vmem:[#allocation13 + $0x8] sm:$0xff]
        %v1147 = vld [vmem:[#allocation13 + $0x10] sm:$0xff]
        %v1148 = vld [vmem:[#allocation13 + $0x18] sm:$0xff]
        %1150 = vset.pattern.permute.xlu0 2
        %1151 = vperm.xlu0 %1150, %v1145
        %v1152 = vpop.permute.xlu0 %1151
        %1155 = vset.pattern.permute.xlu0 2
        %1156 = vperm.xlu0 %1155, %v1146
        %v1157 = vpop.permute.xlu0 %1156
        %1160 = vset.pattern.permute.xlu0 2
        %1161 = vperm.xlu0 %1160, %v1147
        %v1162 = vpop.permute.xlu0 %1161
        %1165 = vset.pattern.permute.xlu0 2
        %1166 = vperm.xlu0 %1165, %v1148
        %v1167 = vpop.permute.xlu0 %1166
        %v1169 = vmul.f32 %v1133, %v1152
        %v1170 = vmul.f32 %v1134, %v1157
        %v1171 = vmul.f32 %v1135, %v1162
        %v1172 = vmul.f32 %v1136, %v1167
        %1173 = vrot.lane.b32.xlu0 %v1133, 2
        %v1174 = vpop.permute.xlu0 %1173
        %1175 = vrot.lane.b32.xlu0 %v1134, 2
        %v1176 = vpop.permute.xlu0 %1175
        %1177 = vrot.lane.b32.xlu0 %v1135, 2
        %v1178 = vpop.permute.xlu0 %1177
        %1179 = vrot.lane.b32.xlu0 %v1136, 2
        %v1180 = vpop.permute.xlu0 %1179
        %v1181 = vadd.s32 %v587, 4294967294
        %vm1182 = vcmp.ge.s32.totalorder %v1181, 0
        %vm1183 = vcmp.lt.s32.totalorder %v1181, 16
        %vm1184 = vmand %vm1182, %vm1183
        %v1185 = vsel %vm1184, 1, 0
        %v1186 = vlaneseq
        %v1187 = vshrl.u32 %v1186, 7
        %v1188 = vsub.s32 0, %v1187
        %v1189 = vrot.slane %v1185, %v1188
        %vm1190 = vcmp.eq.s32.totalorder %v1189, 1
        %v1191 = vsel %vm1190, %v1174, 0.0
        %v1192 = vsel %vm1190, %v1176, 0.0
        %v1193 = vsel %vm1190, %v1178, 0.0
        %v1194 = vsel %vm1190, %v1180, 0.0
        %1195 = vset.pattern.permute.xlu0 0
        %1196 = vperm.xlu0 %1195, %v1145
        %v1197 = vpop.permute.xlu0 %1196
        %1199 = vset.pattern.permute.xlu0 0
        %1200 = vperm.xlu0 %1199, %v1146
        %v1201 = vpop.permute.xlu0 %1200
        %1203 = vset.pattern.permute.xlu0 0
        %1204 = vperm.xlu0 %1203, %v1147
        %v1205 = vpop.permute.xlu0 %1204
        %1207 = vset.pattern.permute.xlu0 0
        %1208 = vperm.xlu0 %1207, %v1148
        %v1209 = vpop.permute.xlu0 %1208
        %v1211 = vmul.f32 %v1191, %v1197
        %v1212 = vmul.f32 %v1192, %v1201
        %v1213 = vmul.f32 %v1193, %v1205
        %v1214 = vmul.f32 %v1194, %v1209
        %v1215 = vadd.f32 %v1169, %v1211
        %v1216 = vadd.f32 %v1170, %v1212
        %v1217 = vadd.f32 %v1171, %v1213
        %v1218 = vadd.f32 %v1172, %v1214
        %1219 = vrot.lane.b32.xlu0 %v1133, 1
        %v1220 = vpop.permute.xlu0 %1219
        %1221 = vrot.lane.b32.xlu0 %v1134, 1
        %v1222 = vpop.permute.xlu0 %1221
        %1223 = vrot.lane.b32.xlu0 %v1135, 1
        %v1224 = vpop.permute.xlu0 %1223
        %1225 = vrot.lane.b32.xlu0 %v1136, 1
        %v1226 = vpop.permute.xlu0 %1225
        %v1227 = vsel %vm1044, %v1220, 0.0
        %v1228 = vsel %vm1044, %v1222, 0.0
        %v1229 = vsel %vm1044, %v1224, 0.0
        %v1230 = vsel %vm1044, %v1226, 0.0
        %1231 = vset.pattern.permute.xlu0 1
        %1232 = vperm.xlu0 %1231, %v1145
        %v1233 = vpop.permute.xlu0 %1232
        %1235 = vset.pattern.permute.xlu0 1
        %1236 = vperm.xlu0 %1235, %v1146
        %v1237 = vpop.permute.xlu0 %1236
        %1239 = vset.pattern.permute.xlu0 1
        %1240 = vperm.xlu0 %1239, %v1147
        %v1241 = vpop.permute.xlu0 %1240
        %1243 = vset.pattern.permute.xlu0 1
        %1244 = vperm.xlu0 %1243, %v1148
        %v1245 = vpop.permute.xlu0 %1244
        %v1247 = vmul.f32 %v1227, %v1233
        %v1248 = vmul.f32 %v1228, %v1237
        %v1249 = vmul.f32 %v1229, %v1241
        %v1250 = vmul.f32 %v1230, %v1245
        %v1251 = vadd.f32 %v1215, %v1247
        %v1252 = vadd.f32 %v1216, %v1248
        %v1253 = vadd.f32 %v1217, %v1249
        %v1254 = vadd.f32 %v1218, %v1250
        %1255 = vrot.lane.b32.xlu0 %v1133, 127
        %v1256 = vpop.permute.xlu0 %1255
        %1257 = vrot.lane.b32.xlu0 %v1134, 127
        %v1258 = vpop.permute.xlu0 %1257
        %1259 = vrot.lane.b32.xlu0 %v1135, 127
        %v1260 = vpop.permute.xlu0 %1259
        %1261 = vrot.lane.b32.xlu0 %v1136, 127
        %v1262 = vpop.permute.xlu0 %1261
        %v1263 = vsel %vm1088, %v1256, 0.0
        %v1264 = vsel %vm1088, %v1258, 0.0
        %v1265 = vsel %vm1088, %v1260, 0.0
        %v1266 = vsel %vm1088, %v1262, 0.0
        %1267 = vset.pattern.permute.xlu0 3
        %1268 = vperm.xlu0 %1267, %v1145
        %v1269 = vpop.permute.xlu0 %1268
        %1271 = vset.pattern.permute.xlu0 3
        %1272 = vperm.xlu0 %1271, %v1146
        %v1273 = vpop.permute.xlu0 %1272
        %1275 = vset.pattern.permute.xlu0 3
        %1276 = vperm.xlu0 %1275, %v1147
        %v1277 = vpop.permute.xlu0 %1276
        %1279 = vset.pattern.permute.xlu0 3
        %1280 = vperm.xlu0 %1279, %v1148
        %v1281 = vpop.permute.xlu0 %1280
        %v1283 = vmul.f32 %v1263, %v1269
        %v1284 = vmul.f32 %v1264, %v1273
        %v1285 = vmul.f32 %v1265, %v1277
        %v1286 = vmul.f32 %v1266, %v1281
        %v1287 = vadd.f32 %v1251, %v1283
        %v1288 = vadd.f32 %v1252, %v1284
        %v1289 = vadd.f32 %v1253, %v1285
        %v1290 = vadd.f32 %v1254, %v1286
        %1291 = vrot.lane.b32.xlu0 %v1133, 126
        %v1292 = vpop.permute.xlu0 %1291
        %1293 = vrot.lane.b32.xlu0 %v1134, 126
        %v1294 = vpop.permute.xlu0 %1293
        %1295 = vrot.lane.b32.xlu0 %v1135, 126
        %v1296 = vpop.permute.xlu0 %1295
        %1297 = vrot.lane.b32.xlu0 %v1136, 126
        %v1298 = vpop.permute.xlu0 %1297
        %vm1299 = vcmp.ge.s32.totalorder %v786, 0
        %vm1300 = vmand %vm1299, %vm787
        %v1301 = vsel %vm1300, 1, 0
        %v1302 = vlaneseq
        %v1303 = vshrl.u32 %v1302, 7
        %v1304 = vsub.s32 0, %v1303
        %v1305 = vrot.slane %v1301, %v1304
        %vm1306 = vcmp.eq.s32.totalorder %v1305, 1
        %v1307 = vsel %vm1306, %v1292, 0.0
        %v1308 = vsel %vm1306, %v1294, 0.0
        %v1309 = vsel %vm1306, %v1296, 0.0
        %v1310 = vsel %vm1306, %v1298, 0.0
        %1311 = vset.pattern.permute.xlu0 4
        %1312 = vperm.xlu0 %1311, %v1145
        %v1313 = vpop.permute.xlu0 %1312
        %1315 = vset.pattern.permute.xlu0 4
        %1316 = vperm.xlu0 %1315, %v1146
        %v1317 = vpop.permute.xlu0 %1316
        %1319 = vset.pattern.permute.xlu0 4
        %1320 = vperm.xlu0 %1319, %v1147
        %v1321 = vpop.permute.xlu0 %1320
        %1323 = vset.pattern.permute.xlu0 4
        %1324 = vperm.xlu0 %1323, %v1148
        %v1325 = vpop.permute.xlu0 %1324
        %v1327 = vmul.f32 %v1307, %v1313
        %v1328 = vmul.f32 %v1308, %v1317
        %v1329 = vmul.f32 %v1309, %v1321
        %v1330 = vmul.f32 %v1310, %v1325
        %v1331 = vadd.f32 %v1287, %v1327
        %v1332 = vadd.f32 %v1288, %v1328
        %v1333 = vadd.f32 %v1289, %v1329
        %v1334 = vadd.f32 %v1290, %v1330
        %v1335 = vmul.f32 %v1331, 0.5
        %v1336 = vmul.f32 %v1332, 0.5
        %v1337 = vmul.f32 %v1333, 0.5
        %v1338 = vmul.f32 %v1334, 0.5
        %v1339 = vmul.f32 %v1331, 0.70710677
        %v1340 = vmul.f32 %v1332, 0.70710677
        %v1341 = vmul.f32 %v1333, 0.70710677
        %v1342 = vmul.f32 %v1334, 0.70710677
        %v1343 = verf.f32.pop %v1339
        %v1344 = verf.f32.pop %v1340
        %v1345 = verf.f32.pop %v1341
        %v1346 = verf.f32.pop %v1342
        %v1347 = vadd.f32 %v1343, 1.0
        %v1348 = vadd.f32 %v1344, 1.0
        %v1349 = vadd.f32 %v1345, 1.0
        %v1350 = vadd.f32 %v1346, 1.0
        %v1351 = vmul.f32 %v1335, %v1347
        %v1352 = vmul.f32 %v1336, %v1348
        %v1353 = vmul.f32 %v1337, %v1349
        %v1354 = vmul.f32 %v1338, %v1350
        %v1355 = vlaneseq
        %v1356 = vshrl.u32 %v1355, 7
        %v1357 = vsub.s32 1, %v1356
        %v1358 = vrot.slane %v996, %v1357
        %v1359 = vmul.f32 %v1351, %v1358
        %v1360 = vmul.f32 %v1352, %v1358
        %v1361 = vmul.f32 %v1353, %v1358
        %v1362 = vmul.f32 %v1354, %v1358
        %v1363 = vadd.f32 %v1141, %v1359
        %v1364 = vadd.f32 %v1142, %v1360
        %v1365 = vadd.f32 %v1143, %v1361
        %v1366 = vadd.f32 %v1144, %v1362
        %1367 = vmatprep.subr.mxu0 0.0
        %1368 = vmatpush1.msra.mxu0 %v588
        %1369 = vmatprep.subr.mxu0 0.0
        %1370 = vmatpush1.msra.mxu0 %v589
        %1371 = vmatprep.subr.mxu0 0.0
        %1372 = vmatpush1.msra.mxu0 %v590
        %1373 = vmatprep.subr.mxu0 0.0
        %1374 = vmatpush1.msra.mxu0 %v591
        %1375 = vmatprep.subr.mxu0 0.0
        %1376 = vmatpush1.msra.mxu0 %v592
        %1377 = vmatprep.subr.mxu0 0.0
        %1378 = vmatpush1.msra.mxu0 %v593
        %1379 = vmatprep.subr.mxu0 0.0
        %1380 = vmatpush1.msra.mxu0 %v594
        %1381 = vmatprep.subr.mxu0 0.0
        %1382 = vmatpush1.msra.mxu0 %v595
        %1383 = vmatprep.subr.mxu0 0.0
        %1384 = vmatpush1.msra.mxu0 %v596
        %1385 = vmatprep.subr.mxu0 0.0
        %1386 = vmatpush1.msra.mxu0 %v597
        %1387 = vmatprep.subr.mxu0 0.0
        %1388 = vmatpush1.msra.mxu0 %v598
        %1389 = vmatprep.subr.mxu0 0.0
        %1390 = vmatpush1.msra.mxu0 %v599
        %1391 = vmatprep.subr.mxu0 0.0
        %1392 = vmatpush1.msra.mxu0 %v600
        %1393 = vmatprep.subr.mxu0 0.0
        %1394 = vmatpush1.msra.mxu0 %v601
        %1395 = vmatprep.subr.mxu0 0.0
        %1396 = vmatpush1.msra.mxu0 %v602
        %1397 = vmatprep.subr.mxu0 0.0
        %1398 = vmatpush1.msra.mxu0 %v603
        %1399 = vmatprep.subr.mxu0 0.0
        %1400 = vmatpush1.msra.mxu0 0.0
        %1401 = vmatprep.subr.mxu0 0.0
        %1402 = vmatpush1.msra.mxu0 0.0
        %1403 = vmatprep.subr.mxu0 0.0
        %1404 = vmatpush1.msra.mxu0 0.0
        %1405 = vmatprep.subr.mxu0 0.0
        %1406 = vmatpush1.msra.mxu0 0.0
        %1407 = vmatprep.subr.mxu0 0.0
        %1408 = vmatpush1.msra.mxu0 0.0
        %1409 = vmatprep.subr.mxu0 0.0
        %1410 = vmatpush1.msra.mxu0 0.0
        %1411 = vmatprep.subr.mxu0 0.0
        %1412 = vmatpush1.msra.mxu0 0.0
        %1413 = vmatprep.subr.mxu0 0.0
        %1414 = vmatpush1.msra.mxu0 0.0
        %1415 = vmatprep.subr.mxu0 0.0
        %1416 = vmatpush1.msra.mxu0 0.0
        %1417 = vmatprep.subr.mxu0 0.0
        %1418 = vmatpush1.msra.mxu0 0.0
        %1419 = vmatprep.subr.mxu0 0.0
        %1420 = vmatpush1.msra.mxu0 0.0
        %1421 = vmatprep.subr.mxu0 0.0
        %1422 = vmatpush1.msra.mxu0 0.0
        %1423 = vmatprep.subr.mxu0 0.0
        %1424 = vmatpush1.msra.mxu0 0.0
        %1425 = vmatprep.subr.mxu0 0.0
        %1426 = vmatpush1.msra.mxu0 0.0
        %1427 = vmatprep.subr.mxu0 0.0
        %1428 = vmatpush1.msra.mxu0 0.0
        %1429 = vmatprep.subr.mxu0 0.0
        %1430 = vmatpush1.msra.mxu0 0.0
        %1431 = vmatprep.mubr.f32.mxu0 0.0
        %1432 = vmatmul.mubr.f32.gmra.mrb[0].mxu0 %v1351
        %v1433 = vpop.f32.mrb[0].mxu0
        %v1434 = vadd.f32 0.0, %v1433
        %v1435 = vpop.f32.mrb[0].mxu0
        %1436 = vmatprep.mubr.f32.mxu0 0.0
        %1437 = vmatmul.mubr.f32.gmra.mrb[0].mxu0 %v1352
        %v1438 = vpop.f32.mrb[0].mxu0
        %v1439 = vadd.f32 0.0, %v1438
        %v1440 = vpop.f32.mrb[0].mxu0
        %1441 = vmatprep.mubr.f32.mxu0 0.0
        %1442 = vmatmul.mubr.f32.gmra.mrb[0].mxu0 %v1353
        %v1443 = vpop.f32.mrb[0].mxu0
        %v1444 = vadd.f32 0.0, %v1443
        %v1445 = vpop.f32.mrb[0].mxu0
        %1446 = vmatprep.mubr.f32.mxu0 0.0
        %1447 = vmatmul.mubr.f32.gmra.mrb[0].mxu0 %v1354
        %v1448 = vpop.f32.mrb[0].mxu0
        %v1449 = vadd.f32 0.0, %v1448
        %v1450 = vpop.f32.mrb[0].mxu0
        %1451 = vdwg.mxu0
        %v1452 = vmul.f32 %v1434, 0.0625
        %v1453 = vmul.f32 %v1439, 0.0625
        %v1454 = vmul.f32 %v1444, 0.0625
        %v1455 = vmul.f32 %v1449, 0.0625
        %v1456 = vmul.f32 %v1452, 0.5
        %v1457 = vmul.f32 %v1453, 0.5
        %v1458 = vmul.f32 %v1454, 0.5
        %v1459 = vmul.f32 %v1455, 0.5
        %v1460 = vmul.f32 %v1452, 0.70710677
        %v1461 = vmul.f32 %v1453, 0.70710677
        %v1462 = vmul.f32 %v1454, 0.70710677
        %v1463 = vmul.f32 %v1455, 0.70710677
        %v1464 = verf.f32.pop %v1460
        %v1465 = verf.f32.pop %v1461
        %v1466 = verf.f32.pop %v1462
        %v1467 = verf.f32.pop %v1463
        %v1468 = vadd.f32 %v1464, 1.0
        %v1469 = vadd.f32 %v1465, 1.0
        %v1470 = vadd.f32 %v1466, 1.0
        %v1471 = vadd.f32 %v1467, 1.0
        %v1472 = vmul.f32 %v1456, %v1468
        %v1473 = vmul.f32 %v1457, %v1469
        %v1474 = vmul.f32 %v1458, %v1470
        %v1475 = vmul.f32 %v1459, %v1471
        %vm1476 = vcmask 64512
        %v1478 = vsel %vm1476, %v1472, 0
        %v1481 = vsel %vm1476, %v1473, 0
        %v1484 = vsel %vm1476, %v1474, 0
        %v1487 = vsel %vm1476, %v1475, 0
        %1489 = vmatprep.subr.mxu0 0.0
        %1490 = vmatpush1.msra.mxu0 %v604
        %1491 = vmatprep.subr.mxu0 0.0
        %1492 = vmatpush1.msra.mxu0 0.0
        %1493 = vmatprep.subr.mxu0 0.0
        %1494 = vmatpush1.msra.mxu0 0.0
        %1495 = vmatprep.subr.mxu0 0.0
        %1496 = vmatpush1.msra.mxu0 0.0
        %1497 = vmatprep.subr.mxu0 0.0
        %1498 = vmatpush1.msra.mxu0 0.0
        %1499 = vmatprep.subr.mxu0 0.0
        %1500 = vmatpush1.msra.mxu0 0.0
        %1501 = vmatprep.subr.mxu0 0.0
        %1502 = vmatpush1.msra.mxu0 0.0
        %1503 = vmatprep.subr.mxu0 0.0
        %1504 = vmatpush1.msra.mxu0 0.0
        %1505 = vmatprep.subr.mxu0 0.0
        %1506 = vmatpush1.msra.mxu0 0.0
        %1507 = vmatprep.subr.mxu0 0.0
        %1508 = vmatpush1.msra.mxu0 0.0
        %1509 = vmatprep.subr.mxu0 0.0
        %1510 = vmatpush1.msra.mxu0 0.0
        %1511 = vmatprep.subr.mxu0 0.0
        %1512 = vmatpush1.msra.mxu0 0.0
        %1513 = vmatprep.subr.mxu0 0.0
        %1514 = vmatpush1.msra.mxu0 0.0
        %1515 = vmatprep.subr.mxu0 0.0
        %1516 = vmatpush1.msra.mxu0 0.0
        %1517 = vmatprep.subr.mxu0 0.0
        %1518 = vmatpush1.msra.mxu0 0.0
        %1519 = vmatprep.subr.mxu0 0.0
        %1520 = vmatpush1.msra.mxu0 0.0
        %1521 = vmatprep.subr.mxu0 0.0
        %1522 = vmatpush1.msra.mxu0 0.0
        %1523 = vmatprep.subr.mxu0 0.0
        %1524 = vmatpush1.msra.mxu0 0.0
        %1525 = vmatprep.subr.mxu0 0.0
        %1526 = vmatpush1.msra.mxu0 0.0
        %1527 = vmatprep.subr.mxu0 0.0
        %1528 = vmatpush1.msra.mxu0 0.0
        %1529 = vmatprep.subr.mxu0 0.0
        %1530 = vmatpush1.msra.mxu0 0.0
        %1531 = vmatprep.subr.mxu0 0.0
        %1532 = vmatpush1.msra.mxu0 0.0
        %1533 = vmatprep.subr.mxu0 0.0
        %1534 = vmatpush1.msra.mxu0 0.0
        %1535 = vmatprep.subr.mxu0 0.0
        %1536 = vmatpush1.msra.mxu0 0.0
        %1537 = vmatprep.subr.mxu0 0.0
        %1538 = vmatpush1.msra.mxu0 0.0
        %1539 = vmatprep.subr.mxu0 0.0
        %1540 = vmatpush1.msra.mxu0 0.0
        %1541 = vmatprep.subr.mxu0 0.0
        %1542 = vmatpush1.msra.mxu0 0.0
        %1543 = vmatprep.subr.mxu0 0.0
        %1544 = vmatpush1.msra.mxu0 0.0
        %1545 = vmatprep.subr.mxu0 0.0
        %1546 = vmatpush1.msra.mxu0 0.0
        %1547 = vmatprep.subr.mxu0 0.0
        %1548 = vmatpush1.msra.mxu0 0.0
        %1549 = vmatprep.subr.mxu0 0.0
        %1550 = vmatpush1.msra.mxu0 0.0
        %1551 = vmatprep.subr.mxu0 0.0
        %1552 = vmatpush1.msra.mxu0 0.0
        %1553 = vmatprep.mubr.f32.mxu0 0.0
        %1554 = vmatmul.mubr.f32.gmra.mrb[0].mxu0 %v1478
        %v1555 = vpop.f32.mrb[0].mxu0
        %v1556 = vadd.f32 0.0, %v1555
        %v1557 = vpop.f32.mrb[0].mxu0
        %1558 = vmatprep.mubr.f32.mxu0 0.0
        %1559 = vmatmul.mubr.f32.gmra.mrb[0].mxu0 %v1481
        %v1560 = vpop.f32.mrb[0].mxu0
        %v1561 = vadd.f32 0.0, %v1560
        %v1562 = vpop.f32.mrb[0].mxu0
        %1563 = vmatprep.mubr.f32.mxu0 0.0
        %1564 = vmatmul.mubr.f32.gmra.mrb[0].mxu0 %v1484
        %v1565 = vpop.f32.mrb[0].mxu0
        %v1566 = vadd.f32 0.0, %v1565
        %v1567 = vpop.f32.mrb[0].mxu0
        %1568 = vmatprep.mubr.f32.mxu0 0.0
        %1569 = vmatmul.mubr.f32.gmra.mrb[0].mxu0 %v1487
        %v1570 = vpop.f32.mrb[0].mxu0
        %v1571 = vadd.f32 0.0, %v1570
        %v1572 = vpop.f32.mrb[0].mxu0
        %1573 = vdwg.mxu0
        %v1574 = vlaneseq
        %v1575 = vshrl.u32 %v1574, 7
        %v1576 = vsub.s32 2, %v1575
        %v1577 = vrot.slane %v996, %v1576
        %v1578 = vmul.f32 %v1556, %v1577
        %v1579 = vmul.f32 %v1561, %v1577
        %v1580 = vmul.f32 %v1566, %v1577
        %v1581 = vmul.f32 %v1571, %v1577
        %v1582 = vadd.f32 %v1363, %v1578
        %v1583 = vadd.f32 %v1364, %v1579
        %v1584 = vadd.f32 %v1365, %v1580
        %v1585 = vadd.f32 %v1366, %v1581
        %v1586 = vld [vmem:[#allocation14] sm:$0xff]
        %v1587 = vld [vmem:[#allocation14 + $0x8] sm:$0xff]
        %v1588 = vld [vmem:[#allocation14 + $0x10] sm:$0xff]
        %v1589 = vld [vmem:[#allocation14 + $0x18] sm:$0xff]
        %v1590 = vld [vmem:[#allocation16] sm:$0xff]
        %v1591 = vld [vmem:[#allocation16 + $0x8] sm:$0xff]
        %v1592 = vld [vmem:[#allocation16 + $0x10] sm:$0xff]
        %v1593 = vld [vmem:[#allocation16 + $0x18] sm:$0xff]
        %1595 = vset.pattern.permute.xlu0 0
        %1596 = vperm.xlu0 %1595, %v1590
        %v1597 = vpop.permute.xlu0 %1596
        %1600 = vset.pattern.permute.xlu0 0
        %1601 = vperm.xlu0 %1600, %v1591
        %v1602 = vpop.permute.xlu0 %1601
        %1605 = vset.pattern.permute.xlu0 0
        %1606 = vperm.xlu0 %1605, %v1592
        %v1607 = vpop.permute.xlu0 %1606
        %1610 = vset.pattern.permute.xlu0 0
        %1611 = vperm.xlu0 %1610, %v1593
        %v1612 = vpop.permute.xlu0 %1611
        %v1615 = vsel %vm633, %v1586, 0
        %v1618 = vsel %vm633, %v1587, 0
        %v1621 = vsel %vm633, %v1588, 0
        %v1624 = vsel %vm633, %v1589, 0
        %1626 = vmatprep.subr.mxu0 0.0
        %1627 = vmatpush1.msra.mxu0 %v1582
        %1628 = vmatprep.subr.mxu0 0.0
        %1629 = vmatpush1.msra.mxu0 %v1583
        %1630 = vmatprep.subr.mxu0 0.0
        %1631 = vmatpush1.msra.mxu0 %v1584
        %1632 = vmatprep.subr.mxu0 0.0
        %1633 = vmatpush1.msra.mxu0 %v1585
        %1634 = vmatprep.subr.mxu0 0.0
        %1635 = vmatpush1.msra.mxu0 0.0
        %1636 = vmatprep.subr.mxu0 0.0
        %1637 = vmatpush1.msra.mxu0 0.0
        %1638 = vmatprep.subr.mxu0 0.0
        %1639 = vmatpush1.msra.mxu0 0.0
        %1640 = vmatprep.subr.mxu0 0.0
        %1641 = vmatpush1.msra.mxu0 0.0
        %1642 = vmatprep.subr.mxu0 0.0
        %1643 = vmatpush1.msra.mxu0 0.0
        %1644 = vmatprep.subr.mxu0 0.0
        %1645 = vmatpush1.msra.mxu0 0.0
        %1646 = vmatprep.subr.mxu0 0.0
        %1647 = vmatpush1.msra.mxu0 0.0
        %1648 = vmatprep.subr.mxu0 0.0
        %1649 = vmatpush1.msra.mxu0 0.0
        %1650 = vmatprep.subr.mxu0 0.0
        %1651 = vmatpush1.msra.mxu0 0.0
        %1652 = vmatprep.subr.mxu0 0.0
        %1653 = vmatpush1.msra.mxu0 0.0
        %1654 = vmatprep.subr.mxu0 0.0
        %1655 = vmatpush1.msra.mxu0 0.0
        %1656 = vmatprep.subr.mxu0 0.0
        %1657 = vmatpush1.msra.mxu0 0.0
        %1658 = vmatprep.subr.mxu0 0.0
        %1659 = vmatpush1.msra.mxu0 0.0
        %1660 = vmatprep.subr.mxu0 0.0
        %1661 = vmatpush1.msra.mxu0 0.0
        %1662 = vmatprep.subr.mxu0 0.0
        %1663 = vmatpush1.msra.mxu0 0.0
        %1664 = vmatprep.subr.mxu0 0.0
        %1665 = vmatpush1.msra.mxu0 0.0
        %1666 = vmatprep.subr.mxu0 0.0
        %1667 = vmatpush1.msra.mxu0 0.0
        %1668 = vmatprep.subr.mxu0 0.0
        %1669 = vmatpush1.msra.mxu0 0.0
        %1670 = vmatprep.subr.mxu0 0.0
        %1671 = vmatpush1.msra.mxu0 0.0
        %1672 = vmatprep.subr.mxu0 0.0
        %1673 = vmatpush1.msra.mxu0 0.0
        %1674 = vmatprep.subr.mxu0 0.0
        %1675 = vmatpush1.msra.mxu0 0.0
        %1676 = vmatprep.subr.mxu0 0.0
        %1677 = vmatpush1.msra.mxu0 0.0
        %1678 = vmatprep.subr.mxu0 0.0
        %1679 = vmatpush1.msra.mxu0 0.0
        %1680 = vmatprep.subr.mxu0 0.0
        %1681 = vmatpush1.msra.mxu0 0.0
        %1682 = vmatprep.subr.mxu0 0.0
        %1683 = vmatpush1.msra.mxu0 0.0
        %1684 = vmatprep.subr.mxu0 0.0
        %1685 = vmatpush1.msra.mxu0 0.0
        %1686 = vmatprep.subr.mxu0 0.0
        %1687 = vmatpush1.msra.mxu0 0.0
        %1688 = vmatprep.subr.mxu0 0.0
        %1689 = vmatpush1.msra.mxu0 0.0
        %1690 = vmatprep.mubr.f32.mxu0 0.0
        %1691 = vmatmul.mubr.f32.gmra.mrb[0].mxu0 %v1615
        %v1692 = vpop.f32.mrb[0].mxu0
        %v1693 = vadd.f32 %v1597, %v1692
        %v1694 = vpop.f32.mrb[0].mxu0
        %1695 = vmatprep.mubr.f32.mxu0 0.0
        %1696 = vmatmul.mubr.f32.gmra.mrb[0].mxu0 %v1618
        %v1697 = vpop.f32.mrb[0].mxu0
        %v1698 = vadd.f32 %v1602, %v1697
        %v1699 = vpop.f32.mrb[0].mxu0
        %1700 = vmatprep.mubr.f32.mxu0 0.0
        %1701 = vmatmul.mubr.f32.gmra.mrb[0].mxu0 %v1621
        %v1702 = vpop.f32.mrb[0].mxu0
        %v1703 = vadd.f32 %v1607, %v1702
        %v1704 = vpop.f32.mrb[0].mxu0
        %1705 = vmatprep.mubr.f32.mxu0 0.0
        %1706 = vmatmul.mubr.f32.gmra.mrb[0].mxu0 %v1624
        %v1707 = vpop.f32.mrb[0].mxu0
        %v1708 = vadd.f32 %v1612, %v1707
        %v1709 = vpop.f32.mrb[0].mxu0
        %1710 = vdwg.mxu0
        %1711 = vrot.lane.b32.xlu0 %v1693, 127
        %v1712 = vpop.permute.xlu0 %1711
        %1713 = vrot.lane.b32.xlu0 %v1698, 127
        %v1714 = vpop.permute.xlu0 %1713
        %1715 = vrot.lane.b32.xlu0 %v1703, 127
        %v1716 = vpop.permute.xlu0 %1715
        %1717 = vrot.lane.b32.xlu0 %v1708, 127
        %v1718 = vpop.permute.xlu0 %1717
        %v1719 = vmax.f32 %v1693, %v1712
        %v1720 = vmax.f32 %v1698, %v1714
        %v1721 = vmax.f32 %v1703, %v1716
        %v1722 = vmax.f32 %v1708, %v1718
        %v1723 = vsel %vm750, %v1719, %v1693
        %v1724 = vsel %vm750, %v1720, %v1698
        %v1725 = vsel %vm750, %v1721, %v1703
        %v1726 = vsel %vm750, %v1722, %v1708
        %1727 = vrot.lane.b32.xlu0 %v1723, 1
        %v1728 = vpop.permute.xlu0 %1727
        %1729 = vrot.lane.b32.xlu0 %v1724, 1
        %v1730 = vpop.permute.xlu0 %1729
        %1731 = vrot.lane.b32.xlu0 %v1725, 1
        %v1732 = vpop.permute.xlu0 %1731
        %1733 = vrot.lane.b32.xlu0 %v1726, 1
        %v1734 = vpop.permute.xlu0 %1733
        %v1735 = vmax.f32 %v1723, %v1728
        %v1736 = vmax.f32 %v1724, %v1730
        %v1737 = vmax.f32 %v1725, %v1732
        %v1738 = vmax.f32 %v1726, %v1734
        %v1739 = vsel %vm773, %v1735, %v1723
        %v1740 = vsel %vm773, %v1736, %v1724
        %v1741 = vsel %vm773, %v1737, %v1725
        %v1742 = vsel %vm773, %v1738, %v1726
        %1743 = vrot.lane.b32.xlu0 %v1739, 126
        %v1744 = vpop.permute.xlu0 %1743
        %1745 = vrot.lane.b32.xlu0 %v1740, 126
        %v1746 = vpop.permute.xlu0 %1745
        %1747 = vrot.lane.b32.xlu0 %v1741, 126
        %v1748 = vpop.permute.xlu0 %1747
        %1749 = vrot.lane.b32.xlu0 %v1742, 126
        %v1750 = vpop.permute.xlu0 %1749
        %v1751 = vmax.f32 %v1739, %v1744
        %v1752 = vmax.f32 %v1740, %v1746
        %v1753 = vmax.f32 %v1741, %v1748
        %v1754 = vmax.f32 %v1742, %v1750
        %v1755 = vsel %vm797, %v1751, %v1739
        %v1756 = vsel %vm797, %v1752, %v1740
        %v1757 = vsel %vm797, %v1753, %v1741
        %v1758 = vsel %vm797, %v1754, %v1742
        %1759 = vrot.lane.b32.xlu0 %v1755, 2
        %v1760 = vpop.permute.xlu0 %1759
        %1761 = vrot.lane.b32.xlu0 %v1756, 2
        %v1762 = vpop.permute.xlu0 %1761
        %1763 = vrot.lane.b32.xlu0 %v1757, 2
        %v1764 = vpop.permute.xlu0 %1763
        %1765 = vrot.lane.b32.xlu0 %v1758, 2
        %v1766 = vpop.permute.xlu0 %1765
        %v1767 = vmax.f32 %v1755, %v1760
        %v1768 = vmax.f32 %v1756, %v1762
        %v1769 = vmax.f32 %v1757, %v1764
        %v1770 = vmax.f32 %v1758, %v1766
        %v1771 = vsel %vm820, %v1767, %v1755
        %v1772 = vsel %vm820, %v1768, %v1756
        %v1773 = vsel %vm820, %v1769, %v1757
        %v1774 = vsel %vm820, %v1770, %v1758
        %1775 = vrot.lane.b32.xlu0 %v1771, 124
        %v1776 = vpop.permute.xlu0 %1775
        %1777 = vrot.lane.b32.xlu0 %v1772, 124
        %v1778 = vpop.permute.xlu0 %1777
        %1779 = vrot.lane.b32.xlu0 %v1773, 124
        %v1780 = vpop.permute.xlu0 %1779
        %1781 = vrot.lane.b32.xlu0 %v1774, 124
        %v1782 = vpop.permute.xlu0 %1781
        %v1783 = vmax.f32 %v1771, %v1776
        %v1784 = vmax.f32 %v1772, %v1778
        %v1785 = vmax.f32 %v1773, %v1780
        %v1786 = vmax.f32 %v1774, %v1782
        %v1787 = vsel %vm844, %v1783, %v1771
        %v1788 = vsel %vm844, %v1784, %v1772
        %v1789 = vsel %vm844, %v1785, %v1773
        %v1790 = vsel %vm844, %v1786, %v1774
        %1791 = vrot.lane.b32.xlu0 %v1787, 4
        %v1792 = vpop.permute.xlu0 %1791
        %1793 = vrot.lane.b32.xlu0 %v1788, 4
        %v1794 = vpop.permute.xlu0 %1793
        %1795 = vrot.lane.b32.xlu0 %v1789, 4
        %v1796 = vpop.permute.xlu0 %1795
        %1797 = vrot.lane.b32.xlu0 %v1790, 4
        %v1798 = vpop.permute.xlu0 %1797
        %v1799 = vmax.f32 %v1787, %v1792
        %v1800 = vmax.f32 %v1788, %v1794
        %v1801 = vmax.f32 %v1789, %v1796
        %v1802 = vmax.f32 %v1790, %v1798
        %v1803 = vsel %vm867, %v1799, %v1787
        %v1804 = vsel %vm867, %v1800, %v1788
        %v1805 = vsel %vm867, %v1801, %v1789
        %v1806 = vsel %vm867, %v1802, %v1790
        %1807 = vrot.lane.b32.xlu0 %v1803, 120
        %v1808 = vpop.permute.xlu0 %1807
        %1809 = vrot.lane.b32.xlu0 %v1804, 120
        %v1810 = vpop.permute.xlu0 %1809
        %1811 = vrot.lane.b32.xlu0 %v1805, 120
        %v1812 = vpop.permute.xlu0 %1811
        %1813 = vrot.lane.b32.xlu0 %v1806, 120
        %v1814 = vpop.permute.xlu0 %1813
        %v1815 = vmax.f32 %v1803, %v1808
        %v1816 = vmax.f32 %v1804, %v1810
        %v1817 = vmax.f32 %v1805, %v1812
        %v1818 = vmax.f32 %v1806, %v1814
        %v1819 = vsel %vm891, %v1815, %v1803
        %v1820 = vsel %vm891, %v1816, %v1804
        %v1821 = vsel %vm891, %v1817, %v1805
        %v1822 = vsel %vm891, %v1818, %v1806
        %1823 = vrot.lane.b32.xlu0 %v1819, 8
        %v1824 = vpop.permute.xlu0 %1823
        %1825 = vrot.lane.b32.xlu0 %v1820, 8
        %v1826 = vpop.permute.xlu0 %1825
        %1827 = vrot.lane.b32.xlu0 %v1821, 8
        %v1828 = vpop.permute.xlu0 %1827
        %1829 = vrot.lane.b32.xlu0 %v1822, 8
        %v1830 = vpop.permute.xlu0 %1829
        %v1831 = vmax.f32 %v1819, %v1824
        %v1832 = vmax.f32 %v1820, %v1826
        %v1833 = vmax.f32 %v1821, %v1828
        %v1834 = vmax.f32 %v1822, %v1830
        %v1835 = vsel %vm914, %v1831, %v1819
        %v1836 = vsel %vm914, %v1832, %v1820
        %v1837 = vsel %vm914, %v1833, %v1821
        %v1838 = vsel %vm914, %v1834, %v1822
        %v1839 = vsub.f32 %v1693, %v1835
        %v1840 = vsub.f32 %v1698, %v1836
        %v1841 = vsub.f32 %v1703, %v1837
        %v1842 = vsub.f32 %v1708, %v1838
        %v1843 = vmul.f32 %v1839, 1.442695
        %v1844 = vpow.pop %v1843
        %v1845 = vmul.f32 %v1840, 1.442695
        %v1846 = vpow.pop %v1845
        %v1847 = vmul.f32 %v1841, 1.442695
        %v1848 = vpow.pop %v1847
        %v1849 = vmul.f32 %v1842, 1.442695
        %v1850 = vpow.pop %v1849
        %1851 = vmatprep.subr.mxu0 0.0
        %1852 = vmatpush1.msra.mxu0 %v588
        %1853 = vmatprep.subr.mxu0 0.0
        %1854 = vmatpush1.msra.mxu0 %v589
        %1855 = vmatprep.subr.mxu0 0.0
        %1856 = vmatpush1.msra.mxu0 %v590
        %1857 = vmatprep.subr.mxu0 0.0
        %1858 = vmatpush1.msra.mxu0 %v591
        %1859 = vmatprep.subr.mxu0 0.0
        %1860 = vmatpush1.msra.mxu0 %v592
        %1861 = vmatprep.subr.mxu0 0.0
        %1862 = vmatpush1.msra.mxu0 %v593
        %1863 = vmatprep.subr.mxu0 0.0
        %1864 = vmatpush1.msra.mxu0 %v594
        %1865 = vmatprep.subr.mxu0 0.0
        %1866 = vmatpush1.msra.mxu0 %v595
        %1867 = vmatprep.subr.mxu0 0.0
        %1868 = vmatpush1.msra.mxu0 %v596
        %1869 = vmatprep.subr.mxu0 0.0
        %1870 = vmatpush1.msra.mxu0 %v597
        %1871 = vmatprep.subr.mxu0 0.0
        %1872 = vmatpush1.msra.mxu0 %v598
        %1873 = vmatprep.subr.mxu0 0.0
        %1874 = vmatpush1.msra.mxu0 %v599
        %1875 = vmatprep.subr.mxu0 0.0
        %1876 = vmatpush1.msra.mxu0 %v600
        %1877 = vmatprep.subr.mxu0 0.0
        %1878 = vmatpush1.msra.mxu0 %v601
        %1879 = vmatprep.subr.mxu0 0.0
        %1880 = vmatpush1.msra.mxu0 %v602
        %1881 = vmatprep.subr.mxu0 0.0
        %1882 = vmatpush1.msra.mxu0 %v603
        %1883 = vmatprep.subr.mxu0 0.0
        %1884 = vmatpush1.msra.mxu0 0.0
        %1885 = vmatprep.subr.mxu0 0.0
        %1886 = vmatpush1.msra.mxu0 0.0
        %1887 = vmatprep.subr.mxu0 0.0
        %1888 = vmatpush1.msra.mxu0 0.0
        %1889 = vmatprep.subr.mxu0 0.0
        %1890 = vmatpush1.msra.mxu0 0.0
        %1891 = vmatprep.subr.mxu0 0.0
        %1892 = vmatpush1.msra.mxu0 0.0
        %1893 = vmatprep.subr.mxu0 0.0
        %1894 = vmatpush1.msra.mxu0 0.0
        %1895 = vmatprep.subr.mxu0 0.0
        %1896 = vmatpush1.msra.mxu0 0.0
        %1897 = vmatprep.subr.mxu0 0.0
        %1898 = vmatpush1.msra.mxu0 0.0
        %1899 = vmatprep.subr.mxu0 0.0
        %1900 = vmatpush1.msra.mxu0 0.0
        %1901 = vmatprep.subr.mxu0 0.0
        %1902 = vmatpush1.msra.mxu0 0.0
        %1903 = vmatprep.subr.mxu0 0.0
        %1904 = vmatpush1.msra.mxu0 0.0
        %1905 = vmatprep.subr.mxu0 0.0
        %1906 = vmatpush1.msra.mxu0 0.0
        %1907 = vmatprep.subr.mxu0 0.0
        %1908 = vmatpush1.msra.mxu0 0.0
        %1909 = vmatprep.subr.mxu0 0.0
        %1910 = vmatpush1.msra.mxu0 0.0
        %1911 = vmatprep.subr.mxu0 0.0
        %1912 = vmatpush1.msra.mxu0 0.0
        %1913 = vmatprep.subr.mxu0 0.0
        %1914 = vmatpush1.msra.mxu0 0.0
        %1915 = vmatprep.mubr.f32.mxu0 0.0
        %1916 = vmatmul.mubr.f32.gmra.mrb[0].mxu0 %v1844
        %v1917 = vpop.f32.mrb[0].mxu0
        %v1918 = vadd.f32 0.0, %v1917
        %v1919 = vpop.f32.mrb[0].mxu0
        %1920 = vmatprep.mubr.f32.mxu0 0.0
        %1921 = vmatmul.mubr.f32.gmra.mrb[0].mxu0 %v1846
        %v1922 = vpop.f32.mrb[0].mxu0
        %v1923 = vadd.f32 0.0, %v1922
        %v1924 = vpop.f32.mrb[0].mxu0
        %1925 = vmatprep.mubr.f32.mxu0 0.0
        %1926 = vmatmul.mubr.f32.gmra.mrb[0].mxu0 %v1848
        %v1927 = vpop.f32.mrb[0].mxu0
        %v1928 = vadd.f32 0.0, %v1927
        %v1929 = vpop.f32.mrb[0].mxu0
        %1930 = vmatprep.mubr.f32.mxu0 0.0
        %1931 = vmatmul.mubr.f32.gmra.mrb[0].mxu0 %v1850
        %v1932 = vpop.f32.mrb[0].mxu0
        %v1933 = vadd.f32 0.0, %v1932
        %v1934 = vpop.f32.mrb[0].mxu0
        %1935 = vdwg.mxu0
        %v1937 = vsel %vm1476, %v1918, 0
        %v1940 = vsel %vm1476, %v1923, 0
        %v1943 = vsel %vm1476, %v1928, 0
        %v1946 = vsel %vm1476, %v1933, 0
        %1948 = vmatprep.subr.mxu0 0.0
        %1949 = vmatpush1.msra.mxu0 %v604
        %1950 = vmatprep.subr.mxu0 0.0
        %1951 = vmatpush1.msra.mxu0 0.0
        %1952 = vmatprep.subr.mxu0 0.0
        %1953 = vmatpush1.msra.mxu0 0.0
        %1954 = vmatprep.subr.mxu0 0.0
        %1955 = vmatpush1.msra.mxu0 0.0
        %1956 = vmatprep.subr.mxu0 0.0
        %1957 = vmatpush1.msra.mxu0 0.0
        %1958 = vmatprep.subr.mxu0 0.0
        %1959 = vmatpush1.msra.mxu0 0.0
        %1960 = vmatprep.subr.mxu0 0.0
        %1961 = vmatpush1.msra.mxu0 0.0
        %1962 = vmatprep.subr.mxu0 0.0
        %1963 = vmatpush1.msra.mxu0 0.0
        %1964 = vmatprep.subr.mxu0 0.0
        %1965 = vmatpush1.msra.mxu0 0.0
        %1966 = vmatprep.subr.mxu0 0.0
        %1967 = vmatpush1.msra.mxu0 0.0
        %1968 = vmatprep.subr.mxu0 0.0
        %1969 = vmatpush1.msra.mxu0 0.0
        %1970 = vmatprep.subr.mxu0 0.0
        %1971 = vmatpush1.msra.mxu0 0.0
        %1972 = vmatprep.subr.mxu0 0.0
        %1973 = vmatpush1.msra.mxu0 0.0
        %1974 = vmatprep.subr.mxu0 0.0
        %1975 = vmatpush1.msra.mxu0 0.0
        %1976 = vmatprep.subr.mxu0 0.0
        %1977 = vmatpush1.msra.mxu0 0.0
        %1978 = vmatprep.subr.mxu0 0.0
        %1979 = vmatpush1.msra.mxu0 0.0
        %1980 = vmatprep.subr.mxu0 0.0
        %1981 = vmatpush1.msra.mxu0 0.0
        %1982 = vmatprep.subr.mxu0 0.0
        %1983 = vmatpush1.msra.mxu0 0.0
        %1984 = vmatprep.subr.mxu0 0.0
        %1985 = vmatpush1.msra.mxu0 0.0
        %1986 = vmatprep.subr.mxu0 0.0
        %1987 = vmatpush1.msra.mxu0 0.0
        %1988 = vmatprep.subr.mxu0 0.0
        %1989 = vmatpush1.msra.mxu0 0.0
        %1990 = vmatprep.subr.mxu0 0.0
        %1991 = vmatpush1.msra.mxu0 0.0
        %1992 = vmatprep.subr.mxu0 0.0
        %1993 = vmatpush1.msra.mxu0 0.0
        %1994 = vmatprep.subr.mxu0 0.0
        %1995 = vmatpush1.msra.mxu0 0.0
        %1996 = vmatprep.subr.mxu0 0.0
        %1997 = vmatpush1.msra.mxu0 0.0
        %1998 = vmatprep.subr.mxu0 0.0
        %1999 = vmatpush1.msra.mxu0 0.0
        %2000 = vmatprep.subr.mxu0 0.0
        %2001 = vmatpush1.msra.mxu0 0.0
        %2002 = vmatprep.subr.mxu0 0.0
        %2003 = vmatpush1.msra.mxu0 0.0
        %2004 = vmatprep.subr.mxu0 0.0
        %2005 = vmatpush1.msra.mxu0 0.0
        %2006 = vmatprep.subr.mxu0 0.0
        %2007 = vmatpush1.msra.mxu0 0.0
        %2008 = vmatprep.subr.mxu0 0.0
        %2009 = vmatpush1.msra.mxu0 0.0
        %2010 = vmatprep.subr.mxu0 0.0
        %2011 = vmatpush1.msra.mxu0 0.0
        %2012 = vmatprep.mubr.f32.mxu0 0.0
        %2013 = vmatmul.mubr.f32.gmra.mrb[0].mxu0 %v1937
        %v2014 = vpop.f32.mrb[0].mxu0
        %v2015 = vadd.f32 0.0, %v2014
        %v2016 = vpop.f32.mrb[0].mxu0
        %2017 = vmatprep.mubr.f32.mxu0 0.0
        %2018 = vmatmul.mubr.f32.gmra.mrb[0].mxu0 %v1940
        %v2019 = vpop.f32.mrb[0].mxu0
        %v2020 = vadd.f32 0.0, %v2019
        %v2021 = vpop.f32.mrb[0].mxu0
        %2022 = vmatprep.mubr.f32.mxu0 0.0
        %2023 = vmatmul.mubr.f32.gmra.mrb[0].mxu0 %v1943
        %v2024 = vpop.f32.mrb[0].mxu0
        %v2025 = vadd.f32 0.0, %v2024
        %v2026 = vpop.f32.mrb[0].mxu0
        %2027 = vmatprep.mubr.f32.mxu0 0.0
        %2028 = vmatmul.mubr.f32.gmra.mrb[0].mxu0 %v1946
        %v2029 = vpop.f32.mrb[0].mxu0
        %v2030 = vadd.f32 0.0, %v2029
        %v2031 = vpop.f32.mrb[0].mxu0
        %2032 = vdwg.mxu0
        %v2033 = vmul.f32 %v583, %v1844
        %v2034 = vmul.f32 %v584, %v1846
        %v2035 = vmul.f32 %v585, %v1848
        %v2036 = vmul.f32 %v586, %v1850
        %v2037 = vrcp.pop %v2015
        %v2038 = vrcp.pop %v2020
        %v2039 = vrcp.pop %v2025
        %v2040 = vrcp.pop %v2030
        %v2041 = vmul.f32 %v2033, %v2037
        %v2042 = vmul.f32 %v2034, %v2038
        %v2043 = vmul.f32 %v2035, %v2039
        %v2044 = vmul.f32 %v2036, %v2040
        %2045 = vmatprep.subr.mxu0 0.0
        %2046 = vmatpush1.xpose.msra.mxu0 %v2041
        %2047 = vmatprep.subr.mxu0 0.0
        %2048 = vmatpush1.xpose.msra.mxu0 %v2042
        %2049 = vmatprep.subr.mxu0 0.0
        %2050 = vmatpush1.xpose.msra.mxu0 %v2043
        %2051 = vmatprep.subr.mxu0 0.0
        %2052 = vmatpush1.xpose.msra.mxu0 %v2044
        %2053 = vmatprep.subr.mxu0 0.0
        %2054 = vmatpush1.xpose.msra.mxu0 0.0
        %2055 = vmatprep.subr.mxu0 0.0
        %2056 = vmatpush1.xpose.msra.mxu0 0.0
        %2057 = vmatprep.subr.mxu0 0.0
        %2058 = vmatpush1.xpose.msra.mxu0 0.0
        %2059 = vmatprep.subr.mxu0 0.0
        %2060 = vmatpush1.xpose.msra.mxu0 0.0
        %2061 = vmatprep.subr.mxu0 0.0
        %2062 = vmatpush1.xpose.msra.mxu0 0.0
        %2063 = vmatprep.subr.mxu0 0.0
        %2064 = vmatpush1.xpose.msra.mxu0 0.0
        %2065 = vmatprep.subr.mxu0 0.0
        %2066 = vmatpush1.xpose.msra.mxu0 0.0
        %2067 = vmatprep.subr.mxu0 0.0
        %2068 = vmatpush1.xpose.msra.mxu0 0.0
        %2069 = vmatprep.subr.mxu0 0.0
        %2070 = vmatpush1.xpose.msra.mxu0 0.0
        %2071 = vmatprep.subr.mxu0 0.0
        %2072 = vmatpush1.xpose.msra.mxu0 0.0
        %2073 = vmatprep.subr.mxu0 0.0
        %2074 = vmatpush1.xpose.msra.mxu0 0.0
        %2075 = vmatprep.subr.mxu0 0.0
        %2076 = vmatpush1.xpose.msra.mxu0 0.0
        %2077 = vmatprep.subr.mxu0 0.0
        %2078 = vmatpush1.xpose.msra.mxu0 0.0
        %2079 = vmatprep.subr.mxu0 0.0
        %2080 = vmatpush1.xpose.msra.mxu0 0.0
        %2081 = vmatprep.subr.mxu0 0.0
        %2082 = vmatpush1.xpose.msra.mxu0 0.0
        %2083 = vmatprep.subr.mxu0 0.0
        %2084 = vmatpush1.xpose.msra.mxu0 0.0
        %2085 = vmatprep.subr.mxu0 0.0
        %2086 = vmatpush1.xpose.msra.mxu0 0.0
        %2087 = vmatprep.subr.mxu0 0.0
        %2088 = vmatpush1.xpose.msra.mxu0 0.0
        %2089 = vmatprep.subr.mxu0 0.0
        %2090 = vmatpush1.xpose.msra.mxu0 0.0
        %2091 = vmatprep.subr.mxu0 0.0
        %2092 = vmatpush1.xpose.msra.mxu0 0.0
        %2093 = vmatprep.subr.mxu0 0.0
        %2094 = vmatpush1.xpose.msra.mxu0 0.0
        %2095 = vmatprep.subr.mxu0 0.0
        %2096 = vmatpush1.xpose.msra.mxu0 0.0
        %2097 = vmatprep.subr.mxu0 0.0
        %2098 = vmatpush1.xpose.msra.mxu0 0.0
        %2099 = vmatprep.subr.mxu0 0.0
        %2100 = vmatpush1.xpose.msra.mxu0 0.0
        %2101 = vmatprep.subr.mxu0 0.0
        %2102 = vmatpush1.xpose.msra.mxu0 0.0
        %2103 = vmatprep.subr.mxu0 0.0
        %2104 = vmatpush1.xpose.msra.mxu0 0.0
        %2105 = vmatprep.subr.mxu0 0.0
        %2106 = vmatpush1.xpose.msra.mxu0 0.0
        %2107 = vmatprep.subr.mxu0 0.0
        %2108 = vmatpush1.xpose.msra.mxu0 0.0
        %2109 = vmatprep.mubr.f32.mxu0 0.0
        %2110 = vmatmul.mubr.f32.gmra.mrb[0].mxu0 %v604
        %v2111 = vpop.f32.mrb[0].mxu0
        %v2112 = vadd.f32 0.0, %v2111
        %v2113 = vpop.f32.mrb[0].mxu0
        %2114 = vdwg.mxu0
        %2115 = vst.msk [vmem:[%s582] sm:$0xff] %vm633, %v2112
        %s2116 = sand.u32 %s300, 1
        %s2117 = scalar_lea.sflag [#allocation4], %s2116
        %s2118 = sand.u32 %s300, 1
        %s2119 = smul.addr %s2118, 8
        %s2120 = scalar_lea.vmem [#allocation22], %s2119
        // Predicated region
        $region117: #{tpu_custom_call.1} parent=67 // pred_check
          %p2121 = pneg %p310
        $region118: #{tpu_custom_call.1} parent=67 // pred_check_branch
          %2123 = sbr.rel (%p2121) target = $region120
        $region119: #{tpu_custom_call.1} parent=67 // pred_region
          %s2125 = ssub.s32 128, 128
          %2126 = vsyncadd %s2117, %s2125
          %s2127 = smul.addr %s35, 128
          %s2128 = scalar_lea.hbm %s12, %s2127
          %s2130 = sshll.u32 %s2120, 4
          %s2131 = int_to_ptr.vmem [resolvable:$true] %s2130
          %2133 = dma.vmem_to_hbm [thread:$0]  %s2131, 128, %s2128, %s2117
        $region120: #{tpu_custom_call.1} parent=67 // pred_fallthru
          _
      $region68: #{tpu_custom_call.1} parent=5 // pred_fallthru
        _
      %p2134 = scmp.le.s32.totalorder 2, %s30
      // Predicated region
      $region121: #{tpu_custom_call.1} parent=5 // pred_check
        %p2135 = pneg %p2134
      $region122: #{tpu_custom_call.1} parent=5 // pred_check_branch
        %2137 = sbr.rel (%p2135) target = $region124
      $region123: #{tpu_custom_call.1} parent=5 // pred_region
        %s2138 = ssub.s32 %s30, 2
        // Predicated region
        $region125: #{tpu_custom_call.1} parent=123 // pred_check
          %p2139 = pneg %p316
        $region126: #{tpu_custom_call.1} parent=123 // pred_check_branch
          %2141 = sbr.rel (%p2139) target = $region128
        $region127: #{tpu_custom_call.1} parent=123 // pred_region
          %s2142 = sand.u32 %s301, 1
          %s2143 = scalar_lea.sflag [#allocation4], %s2142
          %s2144 = sand.u32 %s301, 1
          %s2145 = smul.addr %s2144, 8
          %s2146 = scalar_lea.vmem [#allocation22], %s2145
          %2147 = dma.done %s2143, 128
        $region128: #{tpu_custom_call.1} parent=123 // pred_fallthru
          _
      $region124: #{tpu_custom_call.1} parent=5 // pred_fallthru
        _
    $region6: #{tpu_custom_call.1} parent=1 // loop_footer
      %s34 = sadd.s32 1, %s30
    $region7: #{tpu_custom_call.1} parent=1 // loop_footer_branch
      %29 = sbr.rel target = $region3
    $region8: #{tpu_custom_call.1} parent=1 // loop_exit
      _
    %2148 = vsyncpa [#allocation3], 1
    %s2149 = scalar_lea.sflag [#allocation3], 1
    %2150 = vsyncpa %s2149, 1
    %2151 = vsyncpa [#allocation6], 1
    %2152 = vsyncpa [#allocation9], 1
    %2153 = vsyncpa [#allocation12], 1
    %2154 = vsyncpa [#allocation15], 1
    %2155 = vsyncpa [#allocation18], 1
    %2156 = vsyncpa [#allocation21], 1
    %2157 = vsyncpa [#allocation4], 1
    %s2158 = scalar_lea.sflag [#allocation4], 1
    %2159 = vsyncpa %s2158, 1

</llo_original>
